<compile_context>
chip_gen: v7x
topology: tpu7x:2x2x1
jax: 0.10.0
libtpu: 0.0.40
codegen_flags: <defaults>
</compile_context>

<pallas_src>
import functools

import jax
import jax.numpy as jnp
from jax.experimental import pallas as pl
from jax.experimental.pallas import tpu as pltpu


# ----------------------------------------------------------------------------
# Generation-aware VMEM scoped limit (decided ONCE at import, not per call).
# ----------------------------------------------------------------------------
def _default_vmem_limit():
    try:
        cap = int(pltpu.get_tpu_info().vmem_capacity_bytes)
    except Exception:
        return 32 * 1024 * 1024
    if cap >= 128 * 1024 * 1024:      # v5e / v6e: 128 MiB physical VMEM
        return 64 * 1024 * 1024
    return 48 * 1024 * 1024           # v7x: 64 MiB physical -> leave headroom


_VMEM_LIMIT = _default_vmem_limit()


# ----------------------------------------------------------------------------
# Hoisted index maps (stable identities, no per-call lambdas).
# ----------------------------------------------------------------------------
def _x_map(i, h):
    return (i, 0)


def _w1_map(i, h):
    return (0, h)


def _b1_map(i, h):
    return (0, h)


def _w2_map(i, h):
    return (h, 0)


def _b2_map(i, h):
    return (0, 0)


def _out_map(i, h):
    return (i, 0)


def _perm_in_map(b, r):
    return (b, r, 0)


def _perm_out_map(b, r):
    return (b, 0, r)


# ----------------------------------------------------------------------------
# Kernel 1: fused LayerNorm + MLP (fc1 -> GELU -> fc2) + residual add
#   out = x + fc2(gelu(fc1(layernorm(x))))
# Grid: (token tiles [parallel], hidden tiles [arbitrary / reduction for fc2]).
# ----------------------------------------------------------------------------
def _ln_mlp_residual_kernel(x_ref, w1_ref, b1_ref, w2_ref, b2_ref, o_ref,
                            y_ref, acc_ref, *, eps):
    h = pl.program_id(1)

    @pl.when(h == 0)
    def _():
        x = x_ref[...].astype(jnp.float32)
        mu = jnp.mean(x, axis=-1, keepdims=True)
        xc = x - mu
        var = jnp.mean(xc * xc, axis=-1, keepdims=True)      # biased var (torch LN)
        # gamma/beta already folded into fc1 on the host -> normalize only.
        y_ref[...] = (xc * jax.lax.rsqrt(var + eps)).astype(y_ref.dtype)
        acc_ref[...] = jnp.zeros_like(acc_ref)

    # bf16 MXU matmuls with f32 accumulation.
    hid = jnp.dot(y_ref[...], w1_ref[...],
                  preferred_element_type=jnp.float32)          # (tr, th) f32
    hid = hid + b1_ref[...].astype(jnp.float32)
    # tanh GELU lowers to the EUP (its own VLIW slot) -> essentially free here.
    hid = jax.nn.gelu(hid, approximate=True)
    acc_ref[...] += jnp.dot(hid.astype(w2_ref.dtype), w2_ref[...],
                            preferred_element_type=jnp.float32)

    @pl.when(h == pl.num_programs(1) - 1)
    def _():
        out = (x_ref[...].astype(jnp.float32) + acc_ref[...]
               + b2_ref[...].astype(jnp.float32))
        o_ref[...] = out.astype(o_ref.dtype)


def _pick_hidden_tile(Hd, C, budget):
    """Hidden-dim tile: keep weight tiles to <= budget/4 (rest for activations)."""
    def w_bytes(th):
        # w1 tile (C, th) + w2 tile (th, C), bf16, double-buffered.
        return 2 * (C * th + th * C) * 2

    if w_bytes(Hd) <= budget // 4:
        return Hd
    th = (min(Hd, 2048) // 128) * 128
    while th >= 128:
        if Hd % th == 0 and w_bytes(th) <= budget // 4:
            return th
        th -= 128
    # TODO(synk): no 128-multiple divisor of Hd fits; fall back to resident weights.
    return Hd


def _pick_row_tile(T, C, th, x_itemsize, budget, align):
    """Token tile from a VMEM model including the (tr, th) GELU intermediate."""
    def bytes_for(tr):
        return (2 * 2 * tr * C * x_itemsize      # x in + out blocks, double-buffered
                + tr * C * 2                      # bf16 normalized-x scratch
                + tr * C * 4                      # f32 accumulator scratch
                + tr * th * 4                     # f32 GELU intermediate
                + 2 * (C * th + th * C) * 2       # bf16 weight tiles, double-buffered
                + (th + C) * 4)                   # biases

    cap = 512                                     # matches MXU M tiling; avoids spills
    caps = []
    if T >= 2 * align:
        # Prefer >= 2 row blocks so both v7x TensorCores get work.
        caps.append(min(cap, max(align, (T // 2) // align * align)))
    caps.append(cap)
    for c in caps:
        tr = (min(T, c) // align) * align
        while tr >= align:
            if T % tr == 0 and bytes_for(tr) <= budget:
                return tr
            tr -= align
    return T                                      # small/odd T: full-extent block


def _mlp_residual_branch_impl(x, ln_g, ln_b, w1, b1, w2, b2, *, eps=1e-6):
    """out = x + fc2(gelu(fc1(LayerNorm(x)))) for channels-last x of shape (..., C)."""
    orig_shape = x.shape
    C = int(orig_shape[-1])
    T = 1
    for d in orig_shape[:-1]:
        T *= int(d)
    Hd = int(w1.shape[-1])

    # Pre-fold LayerNorm affine into fc1 (one-time, traced once under jit):
    #   (xhat*g + b) @ w1 + b1 == xhat @ (g[:,None]*w1) + (b @ w1 + b1)
    g32 = ln_g.astype(jnp.float32)
    b32 = ln_b.astype(jnp.float32)
    w1f32 = w1.astype(jnp.float32)
    w1_b = (g32[:, None] * w1f32).astype(jnp.bfloat16)
    b1_f = (b32 @ w1f32 + b1.astype(jnp.float32)).reshape(1, Hd)
    w2_b = w2.astype(jnp.bfloat16)
    b2_r = b2.astype(jnp.float32).reshape(1, C)

    x2 = x.reshape(T, C)
    itemsize = jnp.dtype(x.dtype).itemsize
    budget = _VMEM_LIMIT // 2
    th = _pick_hidden_tile(Hd, C, budget)
    align = 16 if x.dtype == jnp.bfloat16 else 8
    tr = _pick_row_tile(T, C, th, itemsize, budget, align)

    grid = (T // tr, Hd // th)

    cost = pl.CostEstimate(
        flops=4 * T * C * Hd,                      # two matmuls, 2*T*C*Hd each
        transcendentals=T * Hd,                    # GELU tanh
        bytes_accessed=2 * T * C * itemsize + 4 * C * Hd + 4 * (C + Hd))

    out = pl.pallas_call(
        functools.partial(_ln_mlp_residual_kernel, eps=eps),
        out_shape=jax.ShapeDtypeStruct((T, C), x.dtype),
        grid=grid,
        in_specs=[
            pl.BlockSpec((tr, C), _x_map),         # x tokens
            pl.BlockSpec((C, th), _w1_map),        # fc1 weight (gamma folded), bf16
            pl.BlockSpec((1, th), _b1_map),        # fc1 bias (beta folded)
            pl.BlockSpec((th, C), _w2_map),        # fc2 weight, bf16
            pl.BlockSpec((1, C), _b2_map),         # fc2 bias
        ],
        out_specs=pl.BlockSpec((tr, C), _out_map),
        scratch_shapes=[
            pltpu.VMEM((tr, C), jnp.bfloat16),     # normalized x (matmul LHS)
            pltpu.VMEM((tr, C), jnp.float32),      # fc2 accumulator
        ],
        compiler_params=pltpu.CompilerParams(
            dimension_semantics=("parallel", "arbitrary"),
            vmem_limit_bytes=_VMEM_LIMIT,
        ),
        cost_estimate=cost,
    )(x2, w1_b, b1_f, w2_b, b2_r)
    return out.reshape(orig_shape)


mlp_residual_branch = jax.jit(_mlp_residual_branch_impl)


def mt_grootv3d_layer_forward(x, ln2_g, ln2_b, w1, b1, w2, b2):
    """MTGrootV3DLayer forward (post_norm=False, layer_scale=None, drop=0, drop_path=0)."""
    # TODO(synk): MTTree_SSM3D (self.TreeSSM) is not defined in the provided spec, so
    # the first residual branch `x = x + drop_path(TreeSSM(norm1(x)))` is omitted
    # rather than faked; only the well-defined norm2 + MLP residual branch runs here.
    return mlp_residual_branch(x, ln2_g, ln2_b, w1, b1, w2, b2)


def _ref_mlp_residual_branch(x, ln_g, ln_b, w1, b1, w2, b2, eps=1e-6):
    """Pure-JAX reference mirroring the kernel numerics (bf16 matmuls, tanh GELU)."""
    xf = x.astype(jnp.float32)
    mu = jnp.mean(xf, axis=-1, keepdims=True)
    xc = xf - mu
    var = jnp.mean(xc * xc, axis=-1, keepdims=True)
    xhat = xc * jax.lax.rsqrt(var + eps)
    w1_b = (ln_g[:, None] * w1).astype(jnp.bfloat16)
    b1_f = ln_b @ w1 + b1
    h = jnp.dot(xhat.astype(jnp.bfloat16), w1_b,
                preferred_element_type=jnp.float32) + b1_f
    h = jax.nn.gelu(h, approximate=True)
    m = jnp.dot(h.astype(jnp.bfloat16), w2.astype(jnp.bfloat16),
                preferred_element_type=jnp.float32) + b2
    return (xf + m).astype(x.dtype)


# ----------------------------------------------------------------------------
# Kernel 2: lane-dense to_channels_first (NHWC -> NCHW).
# Wrapper views x as (N, H*W, C); kernel writes (N, C, H*W) so the output lane
# dimension is H*W -> unmasked full-lane stores when tiles are 128-multiples.
# ----------------------------------------------------------------------------
def _permute_kernel(x_ref, o_ref):
    o_ref[...] = jnp.transpose(x_ref[...], (0, 2, 1))


def _largest_divisor(n, cap):
    d = min(n, cap)
    while d > 1 and n % d:
        d -= 1
    return max(d, 1)


def _to_channels_first_impl(x):
    """NHWC -> NCHW (torch permute(0, 3, 1, 2)) with lane-dense output tiles."""
    N, H, W, C = (int(d) for d in x.shape)
    HW = H * W
    x2 = x.reshape(N, HW, C)                       # free view of contiguous NHWC
    itemsize = jnp.dtype(x.dtype).itemsize

    budget = _VMEM_LIMIT // 2
    bytes_per_row = 4 * C * itemsize               # (in + out) * double-buffer per row
    max_rows = max(1, budget // bytes_per_row)

    if HW <= max_rows:
        tr = HW
        # Fold batch elements to amortize the ~0.35us/step overhead, but keep
        # grid[0] >= 2 when N >= 2 so both v7x TensorCores get work.
        nb_cap = min(N, max(1, max_rows // HW))
        if N >= 2:
            nb_cap = min(nb_cap, N // 2)
        nb = _largest_divisor(N, max(1, nb_cap))
    else:
        nb = 1
        # Largest multiple-of-128 divisor of HW that fits the budget (output last
        # dim must be a 128-multiple for unmasked full-lane vst).
        tr = 0
        t = (min(HW, max_rows) // 128) * 128
        while t >= 128:
            if HW % t == 0:
                tr = t
                break
            t -= 128
        if tr == 0:
            # TODO(synk): HW has no 128-multiple divisor <= budget; the full-extent
            # block is the only spec-legal choice (may exceed the VMEM budget).
            tr = HW

    grid = (N // nb, HW // tr)
    out = pl.pallas_call(
        _permute_kernel,
        out_shape=jax.ShapeDtypeStruct((N, C, HW), x.dtype),
        grid=grid,
        in_specs=[pl.BlockSpec((nb, tr, C), _perm_in_map)],
        out_specs=pl.BlockSpec((nb, C, tr), _perm_out_map),
        compiler_params=pltpu.CompilerParams(
            dimension_semantics=("parallel", "parallel"),
            vmem_limit_bytes=_VMEM_LIMIT,
        ),
    )(x2)
    return out.reshape(N, C, H, W)                 # free reshape of (N, C, H*W)


to_channels_first = jax.jit(_to_channels_first_impl)


if __name__ == "__main__":
    key = jax.random.PRNGKey(0)
    N, H, W, C = 2, 16, 16, 4
    mlp_ratio = 4.0
    Hd = int(C * mlp_ratio)

    keys = jax.random.split(key, 8)
    x = jax.random.normal(keys[0], (N, H, W, C), dtype=jnp.float32)

    # norm2 (LayerNorm(channels, eps=1e-6)) parameters
    ln_g = 1.0 + 0.1 * jax.random.normal(keys[1], (C,), dtype=jnp.float32)
    ln_b = 0.1 * jax.random.normal(keys[2], (C,), dtype=jnp.float32)
    # MLP parameters (fc1: C->Hd, fc2: Hd->C)
    w1 = 0.1 * jax.random.normal(keys[3], (C, Hd), dtype=jnp.float32)
    b1 = 0.1 * jax.random.normal(keys[4], (Hd,), dtype=jnp.float32)
    w2 = 0.1 * jax.random.normal(keys[5], (Hd, C), dtype=jnp.float32)
    b2 = 0.1 * jax.random.normal(keys[6], (C,), dtype=jnp.float32)

    # ---- layer forward: x = x + mlp(norm2(x)) (TreeSSM branch: see TODO) ----
    y = jax.block_until_ready(mt_grootv3d_layer_forward(x, ln_g, ln_b, w1, b1, w2, b2))
    y_ref = _ref_mlp_residual_branch(x, ln_g, ln_b, w1, b1, w2, b2)
    assert y.shape == x.shape, y.shape
    assert jnp.allclose(y, y_ref, rtol=1e-2, atol=1e-2), "fused LN+MLP mismatch"

    # ---- lane-dense to_channels_first (torch permute(0,3,1,2)) ----
    p = jax.block_until_ready(to_channels_first(x))
    p_ref = jnp.transpose(x, (0, 3, 1, 2))
    assert p.shape == (N, C, H, W), p.shape
    assert jnp.array_equal(p, p_ref), "mismatch vs reference permute"

    print("KERNEL_OK")
</pallas_src>

<mosaic_0001>
module attributes {stable_mosaic.version = 11 : i64} {
  func.func @_ln_mlp_residual_kernel(%arg0: i32, %arg1: i32, %arg2: memref<256x4xf32, #tpu.memory_space<vmem>>, %arg3: memref<4x16xbf16, #tpu.memory_space<vmem>>, %arg4: memref<1x16xf32, #tpu.memory_space<vmem>>, %arg5: memref<16x4xbf16, #tpu.memory_space<vmem>>, %arg6: memref<1x4xf32, #tpu.memory_space<vmem>>, %arg7: memref<256x4xf32, #tpu.memory_space<vmem>>, %arg8: memref<256x4xbf16, #tpu.memory_space<vmem>>, %arg9: memref<256x4xf32, #tpu.memory_space<vmem>>) attributes {dimension_semantics = [#tpu.dimension_semantics<parallel>, #tpu.dimension_semantics<arbitrary>], iteration_bounds = array<i64: 2, 1>, scalar_prefetch = 0 : i64, scratch_operands = 2 : i64, tpu.core_type = #tpu.core_type<tc>, window_params = [{transform_indices = @transform_0, window_bounds = array<i64: 256, 4>}, {transform_indices = @transform_1, window_bounds = array<i64: 4, 16>}, {transform_indices = @transform_2, window_bounds = array<i64: 1, 16>}, {transform_indices = @transform_3, window_bounds = array<i64: 16, 4>}, {pipeline_mode = #tpu.pipeline_mode<synchronous>, transform_indices = @transform_4, window_bounds = array<i64: 1, 4>}, {transform_indices = @transform_5, window_bounds = array<i64: 256, 4>}]} {
    %c0_i32 = arith.constant 0 : i32
    %0 = arith.cmpi eq, %arg1, %c0_i32 : i32
    %1 = arith.extui %0 : i1 to i32
    %c0_i32_0 = arith.constant 0 : i32
    %2 = arith.cmpi ne, %1, %c0_i32_0 : i32
    scf.if %2 {
      %c0_19 = arith.constant 0 : index
      %c0_20 = arith.constant 0 : index
      %31 = vector.load %arg2[%c0_19, %c0_20] : memref<256x4xf32, #tpu.memory_space<vmem>>, vector<256x4xf32>
      %cst_21 = arith.constant dense<0.000000e+00> : vector<256xf32>
      %32 = vector.multi_reduction <add>, %31, %cst_21 [1] : vector<256x4xf32> to vector<256xf32>
      %33 = vector.shape_cast %32 : vector<256xf32> to vector<256x1xf32>
      %cst_22 = arith.constant 4.000000e+00 : f32
      %34 = vector.broadcast %cst_22 : f32 to vector<256x1xf32>
      %35 = arith.divf %33, %34 : vector<256x1xf32>
      %36 = vector.broadcast %35 : vector<256x1xf32> to vector<256x4xf32>
      %37 = arith.subf %31, %36 : vector<256x4xf32>
      %38 = arith.mulf %37, %37 : vector<256x4xf32>
      %cst_23 = arith.constant dense<0.000000e+00> : vector<256xf32>
      %39 = vector.multi_reduction <add>, %38, %cst_23 [1] : vector<256x4xf32> to vector<256xf32>
      %40 = vector.shape_cast %39 : vector<256xf32> to vector<256x1xf32>
      %cst_24 = arith.constant 4.000000e+00 : f32
      %41 = vector.broadcast %cst_24 : f32 to vector<256x1xf32>
      %42 = arith.divf %40, %41 : vector<256x1xf32>
      %cst_25 = arith.constant 9.99999997E-7 : f32
      %43 = vector.broadcast %cst_25 : f32 to vector<256x1xf32>
      %44 = arith.addf %42, %43 : vector<256x1xf32>
      %45 = math.rsqrt %44 : vector<256x1xf32>
      %46 = vector.broadcast %45 : vector<256x1xf32> to vector<256x4xf32>
      %47 = arith.mulf %37, %46 : vector<256x4xf32>
      %48 = arith.truncf %47 : vector<256x4xf32> to vector<256x4xbf16>
      %c0_26 = arith.constant 0 : index
      %c0_27 = arith.constant 0 : index
      %49 = vector.load %arg8[%c0_26, %c0_27] : memref<256x4xbf16, #tpu.memory_space<vmem>>, vector<256x4xbf16>
      tpu.vector_store %arg8[%c0_26, %c0_27], %48 {strides = array<i32>} : memref<256x4xbf16, #tpu.memory_space<vmem>>, vector<256x4xbf16>,
      %cst_28 = arith.constant 0.000000e+00 : f32
      %50 = vector.broadcast %cst_28 : f32 to vector<256x4xf32>
      %c0_29 = arith.constant 0 : index
      %c0_30 = arith.constant 0 : index
      %51 = vector.load %arg9[%c0_29, %c0_30] : memref<256x4xf32, #tpu.memory_space<vmem>>, vector<256x4xf32>
      tpu.vector_store %arg9[%c0_29, %c0_30], %50 {strides = array<i32>} : memref<256x4xf32, #tpu.memory_space<vmem>>, vector<256x4xf32>,
    } else {
    }
    %c0 = arith.constant 0 : index
    %c0_1 = arith.constant 0 : index
    %3 = vector.load %arg8[%c0, %c0_1] : memref<256x4xbf16, #tpu.memory_space<vmem>>, vector<256x4xbf16>
    %c0_2 = arith.constant 0 : index
    %c0_3 = arith.constant 0 : index
    %4 = vector.load %arg3[%c0_2, %c0_3] : memref<4x16xbf16, #tpu.memory_space<vmem>>, vector<4x16xbf16>
    %cst = arith.constant dense<0.000000e+00> : vector<256x16xf32>
    %5 = tpu.matmul %3, %4, %cst {dimension_numbers = #tpu.dot_dimension_numbers<[1], [0], [0], [1], [0, 0, 1, 1], [], []>} : vector<256x4xbf16>, vector<4x16xbf16>, vector<256x16xf32> -> vector<256x16xf32>
    %c0_4 = arith.constant 0 : index
    %c0_5 = arith.constant 0 : index
    %6 = vector.load %arg4[%c0_4, %c0_5] : memref<1x16xf32, #tpu.memory_space<vmem>>, vector<1x16xf32>
    %7 = vector.broadcast %6 : vector<1x16xf32> to vector<256x16xf32>
    %8 = arith.addf %5, %7 : vector<256x16xf32>
    %9 = arith.mulf %8, %8 : vector<256x16xf32>
    %10 = arith.mulf %8, %9 : vector<256x16xf32>
    %cst_6 = arith.constant 4.471500e-02 : f32
    %11 = vector.broadcast %cst_6 : f32 to vector<256x16xf32>
    %12 = arith.mulf %11, %10 : vector<256x16xf32>
    %13 = arith.addf %8, %12 : vector<256x16xf32>
    %cst_7 = arith.constant 0.797884583 : f32
    %14 = vector.broadcast %cst_7 : f32 to vector<256x16xf32>
    %15 = arith.mulf %14, %13 : vector<256x16xf32>
    %16 = math.tanh %15 : vector<256x16xf32>
    %cst_8 = arith.constant 1.000000e+00 : f32
    %17 = vector.broadcast %cst_8 : f32 to vector<256x16xf32>
    %18 = arith.addf %17, %16 : vector<256x16xf32>
    %cst_9 = arith.constant 5.000000e-01 : f32
    %19 = vector.broadcast %cst_9 : f32 to vector<256x16xf32>
    %20 = arith.mulf %19, %18 : vector<256x16xf32>
    %21 = arith.mulf %8, %20 : vector<256x16xf32>
    %c0_10 = arith.constant 0 : index
    %c0_11 = arith.constant 0 : index
    %22 = vector.load %arg9[%c0_10, %c0_11] : memref<256x4xf32, #tpu.memory_space<vmem>>, vector<256x4xf32>
    %23 = arith.truncf %21 : vector<256x16xf32> to vector<256x16xbf16>
    %c0_12 = arith.constant 0 : index
    %c0_13 = arith.constant 0 : index
    %24 = vector.load %arg5[%c0_12, %c0_13] : memref<16x4xbf16, #tpu.memory_space<vmem>>, vector<16x4xbf16>
    %cst_14 = arith.constant dense<0.000000e+00> : vector<256x4xf32>
    %25 = tpu.matmul %23, %24, %cst_14 {dimension_numbers = #tpu.dot_dimension_numbers<[1], [0], [0], [1], [0, 0, 1, 1], [], []>} : vector<256x16xbf16>, vector<16x4xbf16>, vector<256x4xf32> -> vector<256x4xf32>
    %26 = arith.addf %22, %25 : vector<256x4xf32>
    %c0_15 = arith.constant 0 : index
    %c0_16 = arith.constant 0 : index
    %27 = vector.load %arg9[%c0_15, %c0_16] : memref<256x4xf32, #tpu.memory_space<vmem>>, vector<256x4xf32>
    tpu.vector_store %arg9[%c0_15, %c0_16], %26 {strides = array<i32>} : memref<256x4xf32, #tpu.memory_space<vmem>>, vector<256x4xf32>,
    %c0_i32_17 = arith.constant 0 : i32
    %28 = arith.cmpi eq, %arg1, %c0_i32_17 : i32
    %29 = arith.extui %28 : i1 to i32
    %c0_i32_18 = arith.constant 0 : i32
    %30 = arith.cmpi ne, %29, %c0_i32_18 : i32
    scf.if %30 {
      %c0_19 = arith.constant 0 : index
      %c0_20 = arith.constant 0 : index
      %31 = vector.load %arg2[%c0_19, %c0_20] : memref<256x4xf32, #tpu.memory_space<vmem>>, vector<256x4xf32>
      %c0_21 = arith.constant 0 : index
      %c0_22 = arith.constant 0 : index
      %32 = vector.load %arg9[%c0_21, %c0_22] : memref<256x4xf32, #tpu.memory_space<vmem>>, vector<256x4xf32>
      %33 = arith.addf %31, %32 : vector<256x4xf32>
      %c0_23 = arith.constant 0 : index
      %c0_24 = arith.constant 0 : index
      %34 = vector.load %arg6[%c0_23, %c0_24] : memref<1x4xf32, #tpu.memory_space<vmem>>, vector<1x4xf32>
      %35 = vector.broadcast %34 : vector<1x4xf32> to vector<256x4xf32>
      %36 = arith.addf %33, %35 : vector<256x4xf32>
      %c0_25 = arith.constant 0 : index
      %c0_26 = arith.constant 0 : index
      %37 = vector.load %arg7[%c0_25, %c0_26] : memref<256x4xf32, #tpu.memory_space<vmem>>, vector<256x4xf32>
      tpu.vector_store %arg7[%c0_25, %c0_26], %36 {strides = array<i32>} : memref<256x4xf32, #tpu.memory_space<vmem>>, vector<256x4xf32>,
    } else {
    }
    return
  }
  func.func @transform_0(%arg0: i32, %arg1: i32) -> (i32, i32) {
    %c0_i32 = arith.constant 0 : i32
    %c0_i32_0 = arith.constant 0 : i32
    return %arg0, %c0_i32 : i32, i32
  }
  func.func @transform_1(%arg0: i32, %arg1: i32) -> (i32, i32) {
    %c0_i32 = arith.constant 0 : i32
    %c0_i32_0 = arith.constant 0 : i32
    return %c0_i32, %arg1 : i32, i32
  }
  func.func @transform_2(%arg0: i32, %arg1: i32) -> (i32, i32) {
    %c0_i32 = arith.constant 0 : i32
    %c0_i32_0 = arith.constant 0 : i32
    return %c0_i32, %arg1 : i32, i32
  }
  func.func @transform_3(%arg0: i32, %arg1: i32) -> (i32, i32) {
    %c0_i32 = arith.constant 0 : i32
    %c0_i32_0 = arith.constant 0 : i32
    return %arg1, %c0_i32 : i32, i32
  }
  func.func @transform_4(%arg0: i32, %arg1: i32) -> (i32, i32) {
    %c0_i32 = arith.constant 0 : i32
    %c0_i32_0 = arith.constant 0 : i32
    %c0_i32_1 = arith.constant 0 : i32
    return %c0_i32, %c0_i32_0 : i32, i32
  }
  func.func @transform_5(%arg0: i32, %arg1: i32) -> (i32, i32) {
    %c0_i32 = arith.constant 0 : i32
    %c0_i32_0 = arith.constant 0 : i32
    return %arg0, %c0_i32 : i32, i32
  }
}

</mosaic_0001>

<llo_original>
// kernel: _mlp_residual_branch_impl.1
$region0: #{_mlp_residual_branch_impl.1}
  #allocation0 [shape = 'u32[]', space=smem, size = 0x4, offset = 0x4, fixed_abs, tag = 'smem constant byte address 0x4 - core index']
  #allocation1 [shape = 'u32[144,128]{1,0:T(1,128)}', space=vmem, size = 0x12000, scoped, tag = 'internal scratch']
  #allocation2 [shape = 'bf16[256,4]{1,0:T(16,128)(2,1)}', space=vmem, size = 0x10000, scoped, tag = 'scratch operand']
  #allocation3 [shape = 'f32[256,4]{1,0:T(8,128)}', space=vmem, size = 0x20000, scoped, tag = 'scratch operand']
  %s0 = inlined_call_operand.vmem [shape: f32[512,4], index: 0, kind: input, shape index: {}]
  %s1 = inlined_call_operand.vmem [shape: bf16[4,16], index: 1, kind: input, shape index: {}]
  %s2 = inlined_call_operand.vmem [shape: f32[1,16], index: 2, kind: input, shape index: {}]
  %s3 = inlined_call_operand.vmem [shape: bf16[16,4], index: 3, kind: input, shape index: {}]
  %s4 = inlined_call_operand.vmem [shape: f32[1,4], index: 4, kind: input, shape index: {}]
  %s5 = inlined_call_operand.vmem [shape: f32[512,4], index: 5, kind: output, shape index: {}]
  %s6 = sld [smem:[#allocation0]]
  $region61: #{_mlp_residual_branch_impl.1} parent=0
    _
  %s8 = ssub.s32 1, %s6
  %s9 = scalar_select 0, %s8, %s6
  loop: start=0, step=1, limit=4
  $region2: #{_mlp_residual_branch_impl.1} parent=0 // loop_pre_header
    _
  $region3: #{_mlp_residual_branch_impl.1} parent=0 // loop_header
    %s11 = sphi 0, %s15
    %p12 = scmp.ge.s32.totalorder %s11, 4
    %s18 = sphi 0, %s30
    %s19 = sphi 0, %s26
    %s20 = sphi 0, %s18
    %s21 = sphi 0, %s19
    %s22 = sphi 0, %s20
    %s23 = sphi 0, %s21
    %s33 = sphi 0, %s35
    %s36 = sphi 0, %s33
    %s37 = sphi 0, %s36
    %s53 = sphi 0, %s37
    %s59 = sphi 0, %s61
    %s62 = sphi 0, %s59
    %s63 = sphi 0, %s62
    %s79 = sphi 0, %s63
    %s85 = sphi 0, %s87
    %s88 = sphi 0, %s85
    %s89 = sphi 0, %s88
    %s105 = sphi 0, %s89
    %s111 = sphi 0, %s113
    %s114 = sphi 0, %s111
    %s115 = sphi 0, %s114
    %s131 = sphi 0, %s115
    %s135 = sphi 0, %s135
    %s137 = sphi 0, %s135
    %s138 = sphi 0, %s137
    %s152 = sphi 0, %s138
    %s158 = sphi 0, %s160
    %s161 = sphi 0, %s158
    %s162 = sphi 0, %s161
    %s178 = sphi 0, %s162
  $region4: #{_mlp_residual_branch_impl.1} parent=0 // loop_header_branch
    %14 = sbr.rel (%p12) target = $region8
  $region5: #{_mlp_residual_branch_impl.1} parent=0 // loop_body
    %s16 = ssub.s32 %s11, 1
    %s17 = ssub.s32 %s11, 2
    %s24 = sadd.s32 1, %s19
    %p25 = scmp.ge.s32.totalorder %s24, 1
    %s26 = scalar_select %p25, 0, %s24
    %s27 = sadd.s32 1, %s18
    %s28 = scalar_select %p25, %s27, %s18
    %p29 = scmp.ge.s32.totalorder %s28, 2
    %s30 = scalar_select %p29, 0, %s28
    %s31 = ssub.s32 %s18, %s30
    %p32 = scmp.eq.s32.totalorder %s31, 0
    %s34 = sadd.s32 %s33, 1
    %s35 = scalar_select %p32, %s33, %s34
    %p38 = pneg %p32
    %p39 = scmp.eq.s32.totalorder %s11, 1
    %p40 = por %p38, %p39
    %p41 = scmp.ne.s32.totalorder %s33, %s36
    %p42 = scmp.eq.s32.totalorder %s11, 0
    %p43 = por %p41, %p42
    %p44 = scmp.ne.s32.totalorder %s33, %s36
    %p45 = scmp.eq.s32.totalorder %s16, 1
    %p46 = por %p44, %p45
    %p47 = scmp.ne.s32.totalorder %s36, %s37
    %p48 = scmp.eq.s32.totalorder %s16, 0
    %p49 = por %p47, %p48
    %p50 = scmp.ne.s32.totalorder %s36, %s37
    %p51 = scmp.eq.s32.totalorder %s17, 1
    %p52 = por %p50, %p51
    %p54 = scmp.ne.s32.totalorder %s37, %s53
    %p55 = scmp.eq.s32.totalorder %s17, 0
    %p56 = por %p54, %p55
    %s57 = ssub.s32 %s19, %s26
    %p58 = scmp.eq.s32.totalorder %s57, 0
    %s60 = sadd.s32 %s59, 1
    %s61 = scalar_select %p58, %s59, %s60
    %p64 = pneg %p58
    %p65 = scmp.eq.s32.totalorder %s11, 1
    %p66 = por %p64, %p65
    %p67 = scmp.ne.s32.totalorder %s59, %s62
    %p68 = scmp.eq.s32.totalorder %s11, 0
    %p69 = por %p67, %p68
    %p70 = scmp.ne.s32.totalorder %s59, %s62
    %p71 = scmp.eq.s32.totalorder %s16, 1
    %p72 = por %p70, %p71
    %p73 = scmp.ne.s32.totalorder %s62, %s63
    %p74 = scmp.eq.s32.totalorder %s16, 0
    %p75 = por %p73, %p74
    %p76 = scmp.ne.s32.totalorder %s62, %s63
    %p77 = scmp.eq.s32.totalorder %s17, 1
    %p78 = por %p76, %p77
    %p80 = scmp.ne.s32.totalorder %s63, %s79
    %p81 = scmp.eq.s32.totalorder %s17, 0
    %p82 = por %p80, %p81
    %s83 = ssub.s32 %s19, %s26
    %p84 = scmp.eq.s32.totalorder %s83, 0
    %s86 = sadd.s32 %s85, 1
    %s87 = scalar_select %p84, %s85, %s86
    %p90 = pneg %p84
    %p91 = scmp.eq.s32.totalorder %s11, 1
    %p92 = por %p90, %p91
    %p93 = scmp.ne.s32.totalorder %s85, %s88
    %p94 = scmp.eq.s32.totalorder %s11, 0
    %p95 = por %p93, %p94
    %p96 = scmp.ne.s32.totalorder %s85, %s88
    %p97 = scmp.eq.s32.totalorder %s16, 1
    %p98 = por %p96, %p97
    %p99 = scmp.ne.s32.totalorder %s88, %s89
    %p100 = scmp.eq.s32.totalorder %s16, 0
    %p101 = por %p99, %p100
    %p102 = scmp.ne.s32.totalorder %s88, %s89
    %p103 = scmp.eq.s32.totalorder %s17, 1
    %p104 = por %p102, %p103
    %p106 = scmp.ne.s32.totalorder %s89, %s105
    %p107 = scmp.eq.s32.totalorder %s17, 0
    %p108 = por %p106, %p107
    %s109 = ssub.s32 %s19, %s26
    %p110 = scmp.eq.s32.totalorder %s109, 0
    %s112 = sadd.s32 %s111, 1
    %s113 = scalar_select %p110, %s111, %s112
    %p116 = pneg %p110
    %p117 = scmp.eq.s32.totalorder %s11, 1
    %p118 = por %p116, %p117
    %p119 = scmp.ne.s32.totalorder %s111, %s114
    %p120 = scmp.eq.s32.totalorder %s11, 0
    %p121 = por %p119, %p120
    %p122 = scmp.ne.s32.totalorder %s111, %s114
    %p123 = scmp.eq.s32.totalorder %s16, 1
    %p124 = por %p122, %p123
    %p125 = scmp.ne.s32.totalorder %s114, %s115
    %p126 = scmp.eq.s32.totalorder %s16, 0
    %p127 = por %p125, %p126
    %p128 = scmp.ne.s32.totalorder %s114, %s115
    %p129 = scmp.eq.s32.totalorder %s17, 1
    %p130 = por %p128, %p129
    %p132 = scmp.ne.s32.totalorder %s115, %s131
    %p133 = scmp.eq.s32.totalorder %s17, 0
    %p134 = por %p132, %p133
    %s136 = sadd.s32 %s135, 1
    %p139 = scmp.eq.s32.totalorder %s11, 1
    %p140 = scmp.ne.s32.totalorder %s135, %s137
    %p141 = scmp.eq.s32.totalorder %s11, 0
    %p142 = por %p140, %p141
    %p143 = scmp.ne.s32.totalorder %s135, %s137
    %p144 = scmp.eq.s32.totalorder %s16, 1
    %p145 = por %p143, %p144
    %p146 = scmp.ne.s32.totalorder %s137, %s138
    %p147 = scmp.eq.s32.totalorder %s16, 0
    %p148 = por %p146, %p147
    %p149 = scmp.ne.s32.totalorder %s137, %s138
    %p150 = scmp.eq.s32.totalorder %s17, 1
    %p151 = por %p149, %p150
    %p153 = scmp.ne.s32.totalorder %s138, %s152
    %p154 = scmp.eq.s32.totalorder %s17, 0
    %p155 = por %p153, %p154
    %s156 = ssub.s32 %s18, %s30
    %p157 = scmp.eq.s32.totalorder %s156, 0
    %s159 = sadd.s32 %s158, 1
    %s160 = scalar_select %p157, %s158, %s159
    %p163 = pneg %p157
    %p164 = scmp.eq.s32.totalorder %s11, 1
    %p165 = por %p163, %p164
    %p166 = scmp.ne.s32.totalorder %s158, %s161
    %p167 = scmp.eq.s32.totalorder %s11, 0
    %p168 = por %p166, %p167
    %p169 = scmp.ne.s32.totalorder %s158, %s161
    %p170 = scmp.eq.s32.totalorder %s16, 1
    %p171 = por %p169, %p170
    %p172 = scmp.ne.s32.totalorder %s161, %s162
    %p173 = scmp.eq.s32.totalorder %s16, 0
    %p174 = por %p172, %p173
    %p175 = scmp.ne.s32.totalorder %s161, %s162
    %p176 = scmp.eq.s32.totalorder %s17, 1
    %p177 = por %p175, %p176
    %p179 = scmp.ne.s32.totalorder %s162, %s178
    %p180 = scmp.eq.s32.totalorder %s17, 0
    %p181 = por %p179, %p180
    %p182 = scmp.le.s32.totalorder 1, %s11
    %p183 = scmp.lt.s32.totalorder %s11, 3
    %p184 = pnand %p182, %p183
    %p185 = pneg %p184
    // Predicated region
    $region9: #{_mlp_residual_branch_impl.1} parent=5 // pred_check
      _
    $region10: #{_mlp_residual_branch_impl.1} parent=5 // pred_check_branch
      %187 = sbr.rel (%p184) target = $region12
    $region11: #{_mlp_residual_branch_impl.1} parent=5 // pred_region
      %s188 = ssub.s32 %s11, 1
      // Predicated region
      $region13: #{_mlp_residual_branch_impl.1} parent=11 // pred_check
        %p189 = pneg %p75
      $region14: #{_mlp_residual_branch_impl.1} parent=11 // pred_check_branch
        %191 = sbr.rel (%p189) target = $region16
      $region15: #{_mlp_residual_branch_impl.1} parent=11 // pred_region
        %p192 = scmp.lt.s32.totalorder %s21, 0
        %s193 = scalar_select %p192, %s21, 0
        %s194 = smul.addr %s193, 2
        %s195 = scalar_lea.vmem %s1, %s194
      $region16: #{_mlp_residual_branch_impl.1} parent=11 // pred_fallthru
        _
      // Predicated region
      $region17: #{_mlp_residual_branch_impl.1} parent=11 // pred_check
        %p196 = pneg %p101
      $region18: #{_mlp_residual_branch_impl.1} parent=11 // pred_check_branch
        %198 = sbr.rel (%p196) target = $region20
      $region19: #{_mlp_residual_branch_impl.1} parent=11 // pred_region
        %p199 = scmp.lt.s32.totalorder %s21, 0
        %s200 = scalar_select %p199, %s21, 0
        %s201 = scalar_lea.vmem %s2, %s200
      $region20: #{_mlp_residual_branch_impl.1} parent=11 // pred_fallthru
        _
      // Predicated region
      $region21: #{_mlp_residual_branch_impl.1} parent=11 // pred_check
        %p202 = pneg %p127
      $region22: #{_mlp_residual_branch_impl.1} parent=11 // pred_check_branch
        %204 = sbr.rel (%p202) target = $region24
      $region23: #{_mlp_residual_branch_impl.1} parent=11 // pred_region
        %s205 = smul.u32 2, %s21
        %p206 = scmp.lt.s32.totalorder %s205, 1
        %s207 = scalar_select %p206, %s205, 1
        %s208 = smul.addr %s207, 4
        %s209 = scalar_lea.vmem %s3, %s208
        %s210 = smul.u32 2, %s21
      $region24: #{_mlp_residual_branch_impl.1} parent=11 // pred_fallthru
        _
      // Predicated region
      $region25: #{_mlp_residual_branch_impl.1} parent=11 // pred_check
        %p211 = pneg %p148
      $region26: #{_mlp_residual_branch_impl.1} parent=11 // pred_check_branch
        %213 = sbr.rel (%p211) target = $region28
      $region27: #{_mlp_residual_branch_impl.1} parent=11 // pred_region
        _
      $region28: #{_mlp_residual_branch_impl.1} parent=11 // pred_fallthru
        _
    $region12: #{_mlp_residual_branch_impl.1} parent=5 // pred_fallthru
      _
    %p214 = scmp.lt.s32.totalorder %s11, 2
    // Predicated region
    $region29: #{_mlp_residual_branch_impl.1} parent=5 // pred_check
      %p215 = pneg %p214
    $region30: #{_mlp_residual_branch_impl.1} parent=5 // pred_check_branch
      %217 = sbr.rel (%p215) target = $region32
    $region31: #{_mlp_residual_branch_impl.1} parent=5 // pred_region
      // Predicated region
      $region33: #{_mlp_residual_branch_impl.1} parent=31 // pred_check
        %p218 = pneg %p43
      $region34: #{_mlp_residual_branch_impl.1} parent=31 // pred_check_branch
        %220 = sbr.rel (%p218) target = $region36
      $region35: #{_mlp_residual_branch_impl.1} parent=31 // pred_region
        %s221 = smul.u32 32, %s18
        %p222 = scmp.lt.s32.totalorder %s221, 63
        %s223 = scalar_select %p222, %s221, 63
        %s224 = smul.addr %s223, 8
        %s225 = scalar_lea.vmem %s0, %s224
        %s226 = smul.u32 32, %s18
      $region36: #{_mlp_residual_branch_impl.1} parent=31 // pred_fallthru
        _
    $region32: #{_mlp_residual_branch_impl.1} parent=5 // pred_fallthru
      _
    %p227 = scmp.le.s32.totalorder 1, %s11
    %p228 = scmp.lt.s32.totalorder %s11, 3
    %p229 = pnand %p227, %p228
    %p230 = pneg %p229
    // Predicated region
    $region37: #{_mlp_residual_branch_impl.1} parent=5 // pred_check
      _
    $region38: #{_mlp_residual_branch_impl.1} parent=5 // pred_check_branch
      %232 = sbr.rel (%p229) target = $region40
    $region39: #{_mlp_residual_branch_impl.1} parent=5 // pred_region
      %s233 = ssub.s32 %s11, 1
      %s234 = smul.u32 32, %s20
      %p235 = scmp.lt.s32.totalorder %s234, 63
      %s236 = scalar_select %p235, %s234, 63
      %s237 = smul.addr %s236, 8
      %s238 = scalar_lea.vmem %s0, %s237
      %p239 = pneg %p49
      %p240 = pneg %p46
      %p241 = scmp.lt.s32.totalorder %s21, 0
      %s242 = scalar_select %p241, %s21, 0
      %s243 = smul.addr %s242, 2
      %s244 = scalar_lea.vmem %s1, %s243
      %p245 = pneg %p75
      %p246 = pneg %p72
      %p247 = scmp.lt.s32.totalorder %s21, 0
      %s248 = scalar_select %p247, %s21, 0
      %s249 = scalar_lea.vmem %s2, %s248
      %p250 = pneg %p101
      %p251 = pneg %p98
      %s252 = smul.u32 2, %s21
      %p253 = scmp.lt.s32.totalorder %s252, 1
      %s254 = scalar_select %p253, %s252, 1
      %s255 = smul.addr %s254, 4
      %s256 = scalar_lea.vmem %s3, %s255
      %p257 = pneg %p127
      %p258 = pneg %p124
      %p259 = pneg %p148
      %p260 = pneg %p145
      %p261 = pneg %p174
      %p262 = pneg %p171
      %s263 = smul.u32 32, %s20
      %p264 = scmp.lt.s32.totalorder %s263, 63
      %s265 = scalar_select %p264, %s263, 63
      %s266 = smul.addr %s265, 8
      %s267 = scalar_lea.vmem %s5, %s266
      %s268 = smul.u32 32, %s20
      %p269 = scmp.lt.s32.totalorder %s268, 63
      %s270 = scalar_select %p269, %s268, 63
      %s271 = smul.addr %s270, 8
      %s272 = scalar_lea.vmem %s0, %s271
      %s273 = smul.u32 32, %s20
      %p274 = scmp.lt.s32.totalorder %s21, 0
      %s275 = scalar_select %p274, %s21, 0
      %s276 = smul.addr %s275, 2
      %s277 = scalar_lea.vmem %s1, %s276
      %p278 = scmp.lt.s32.totalorder %s21, 0
      %s279 = scalar_select %p278, %s21, 0
      %s280 = scalar_lea.vmem %s2, %s279
      %s281 = smul.u32 2, %s21
      %p282 = scmp.lt.s32.totalorder %s281, 1
      %s283 = scalar_select %p282, %s281, 1
      %s284 = smul.addr %s283, 4
      %s285 = scalar_lea.vmem %s3, %s284
      %s286 = smul.u32 2, %s21
      %s287 = smul.u32 32, %s20
      %p288 = scmp.lt.s32.totalorder %s287, 63
      %s289 = scalar_select %p288, %s287, 63
      %s290 = smul.addr %s289, 8
      %s291 = scalar_lea.vmem %s5, %s290
      %s292 = smul.u32 32, %s20
      %p294 = scmp.eq.s32.totalorder %s21, 0
      // Predicated region
      $region41: #{_mlp_residual_branch_impl.1} parent=39 // pred_check
        %p295 = pneg %p294
      $region42: #{_mlp_residual_branch_impl.1} parent=39 // pred_check_branch
        %297 = sbr.rel (%p295) target = $region44
      $region43: #{_mlp_residual_branch_impl.1} parent=39 // pred_region
        %v298 = vld [vmem:[%s272] sm:$0xff]
        %v299 = vld [vmem:[%s272 + $0x8] sm:$0xff]
        %v300 = vld [vmem:[%s272 + $0x10] sm:$0xff]
        %v301 = vld [vmem:[%s272 + $0x18] sm:$0xff]
        %v302 = vld [vmem:[%s272 + $0x20] sm:$0xff]
        %v303 = vld [vmem:[%s272 + $0x28] sm:$0xff]
        %v304 = vld [vmem:[%s272 + $0x30] sm:$0xff]
        %v305 = vld [vmem:[%s272 + $0x38] sm:$0xff]
        %v306 = vld [vmem:[%s272 + $0x40] sm:$0xff]
        %v307 = vld [vmem:[%s272 + $0x48] sm:$0xff]
        %v308 = vld [vmem:[%s272 + $0x50] sm:$0xff]
        %v309 = vld [vmem:[%s272 + $0x58] sm:$0xff]
        %v310 = vld [vmem:[%s272 + $0x60] sm:$0xff]
        %v311 = vld [vmem:[%s272 + $0x68] sm:$0xff]
        %v312 = vld [vmem:[%s272 + $0x70] sm:$0xff]
        %v313 = vld [vmem:[%s272 + $0x78] sm:$0xff]
        %v314 = vld [vmem:[%s272 + $0x80] sm:$0xff]
        %v315 = vld [vmem:[%s272 + $0x88] sm:$0xff]
        %v316 = vld [vmem:[%s272 + $0x90] sm:$0xff]
        %v317 = vld [vmem:[%s272 + $0x98] sm:$0xff]
        %v318 = vld [vmem:[%s272 + $0xa0] sm:$0xff]
        %v319 = vld [vmem:[%s272 + $0xa8] sm:$0xff]
        %v320 = vld [vmem:[%s272 + $0xb0] sm:$0xff]
        %v321 = vld [vmem:[%s272 + $0xb8] sm:$0xff]
        %v322 = vld [vmem:[%s272 + $0xc0] sm:$0xff]
        %v323 = vld [vmem:[%s272 + $0xc8] sm:$0xff]
        %v324 = vld [vmem:[%s272 + $0xd0] sm:$0xff]
        %v325 = vld [vmem:[%s272 + $0xd8] sm:$0xff]
        %v326 = vld [vmem:[%s272 + $0xe0] sm:$0xff]
        %v327 = vld [vmem:[%s272 + $0xe8] sm:$0xff]
        %v328 = vld [vmem:[%s272 + $0xf0] sm:$0xff]
        %v329 = vld [vmem:[%s272 + $0xf8] sm:$0xff]
        %vm330 = vcmask 31744
        %v331 = vsel %vm330, %v298, 0.0
        %332 = vadd.xlane.f32.xlu0 %v331
        %v333 = vpop.xlane.xlu0 %332
        %v334 = vsel %vm330, %v299, 0.0
        %335 = vadd.xlane.f32.xlu0 %v334
        %v336 = vpop.xlane.xlu0 %335
        %v337 = vsel %vm330, %v300, 0.0
        %338 = vadd.xlane.f32.xlu0 %v337
        %v339 = vpop.xlane.xlu0 %338
        %v340 = vsel %vm330, %v301, 0.0
        %341 = vadd.xlane.f32.xlu0 %v340
        %v342 = vpop.xlane.xlu0 %341
        %v343 = vsel %vm330, %v302, 0.0
        %344 = vadd.xlane.f32.xlu0 %v343
        %v345 = vpop.xlane.xlu0 %344
        %v346 = vsel %vm330, %v303, 0.0
        %347 = vadd.xlane.f32.xlu0 %v346
        %v348 = vpop.xlane.xlu0 %347
        %v349 = vsel %vm330, %v304, 0.0
        %350 = vadd.xlane.f32.xlu0 %v349
        %v351 = vpop.xlane.xlu0 %350
        %v352 = vsel %vm330, %v305, 0.0
        %353 = vadd.xlane.f32.xlu0 %v352
        %v354 = vpop.xlane.xlu0 %353
        %v355 = vsel %vm330, %v306, 0.0
        %356 = vadd.xlane.f32.xlu0 %v355
        %v357 = vpop.xlane.xlu0 %356
        %v358 = vsel %vm330, %v307, 0.0
        %359 = vadd.xlane.f32.xlu0 %v358
        %v360 = vpop.xlane.xlu0 %359
        %v361 = vsel %vm330, %v308, 0.0
        %362 = vadd.xlane.f32.xlu0 %v361
        %v363 = vpop.xlane.xlu0 %362
        %v364 = vsel %vm330, %v309, 0.0
        %365 = vadd.xlane.f32.xlu0 %v364
        %v366 = vpop.xlane.xlu0 %365
        %v367 = vsel %vm330, %v310, 0.0
        %368 = vadd.xlane.f32.xlu0 %v367
        %v369 = vpop.xlane.xlu0 %368
        %v370 = vsel %vm330, %v311, 0.0
        %371 = vadd.xlane.f32.xlu0 %v370
        %v372 = vpop.xlane.xlu0 %371
        %v373 = vsel %vm330, %v312, 0.0
        %374 = vadd.xlane.f32.xlu0 %v373
        %v375 = vpop.xlane.xlu0 %374
        %v376 = vsel %vm330, %v313, 0.0
        %377 = vadd.xlane.f32.xlu0 %v376
        %v378 = vpop.xlane.xlu0 %377
        %v379 = vsel %vm330, %v314, 0.0
        %380 = vadd.xlane.f32.xlu0 %v379
        %v381 = vpop.xlane.xlu0 %380
        %v382 = vsel %vm330, %v315, 0.0
        %383 = vadd.xlane.f32.xlu0 %v382
        %v384 = vpop.xlane.xlu0 %383
        %v385 = vsel %vm330, %v316, 0.0
        %386 = vadd.xlane.f32.xlu0 %v385
        %v387 = vpop.xlane.xlu0 %386
        %v388 = vsel %vm330, %v317, 0.0
        %389 = vadd.xlane.f32.xlu0 %v388
        %v390 = vpop.xlane.xlu0 %389
        %v391 = vsel %vm330, %v318, 0.0
        %392 = vadd.xlane.f32.xlu0 %v391
        %v393 = vpop.xlane.xlu0 %392
        %v394 = vsel %vm330, %v319, 0.0
        %395 = vadd.xlane.f32.xlu0 %v394
        %v396 = vpop.xlane.xlu0 %395
        %v397 = vsel %vm330, %v320, 0.0
        %398 = vadd.xlane.f32.xlu0 %v397
        %v399 = vpop.xlane.xlu0 %398
        %v400 = vsel %vm330, %v321, 0.0
        %401 = vadd.xlane.f32.xlu0 %v400
        %v402 = vpop.xlane.xlu0 %401
        %v403 = vsel %vm330, %v322, 0.0
        %404 = vadd.xlane.f32.xlu0 %v403
        %v405 = vpop.xlane.xlu0 %404
        %v406 = vsel %vm330, %v323, 0.0
        %407 = vadd.xlane.f32.xlu0 %v406
        %v408 = vpop.xlane.xlu0 %407
        %v409 = vsel %vm330, %v324, 0.0
        %410 = vadd.xlane.f32.xlu0 %v409
        %v411 = vpop.xlane.xlu0 %410
        %v412 = vsel %vm330, %v325, 0.0
        %413 = vadd.xlane.f32.xlu0 %v412
        %v414 = vpop.xlane.xlu0 %413
        %v415 = vsel %vm330, %v326, 0.0
        %416 = vadd.xlane.f32.xlu0 %v415
        %v417 = vpop.xlane.xlu0 %416
        %v418 = vsel %vm330, %v327, 0.0
        %419 = vadd.xlane.f32.xlu0 %v418
        %v420 = vpop.xlane.xlu0 %419
        %v421 = vsel %vm330, %v328, 0.0
        %422 = vadd.xlane.f32.xlu0 %v421
        %v423 = vpop.xlane.xlu0 %422
        %v424 = vsel %vm330, %v329, 0.0
        %425 = vadd.xlane.f32.xlu0 %v424
        %v426 = vpop.xlane.xlu0 %425
        %v427 = vrcp.pop 4.0
        %v428 = vmul.f32 %v333, %v427
        %v429 = vmul.f32 %v336, %v427
        %v430 = vmul.f32 %v339, %v427
        %v431 = vmul.f32 %v342, %v427
        %v432 = vmul.f32 %v345, %v427
        %v433 = vmul.f32 %v348, %v427
        %v434 = vmul.f32 %v351, %v427
        %v435 = vmul.f32 %v354, %v427
        %v436 = vmul.f32 %v357, %v427
        %v437 = vmul.f32 %v360, %v427
        %v438 = vmul.f32 %v363, %v427
        %v439 = vmul.f32 %v366, %v427
        %v440 = vmul.f32 %v369, %v427
        %v441 = vmul.f32 %v372, %v427
        %v442 = vmul.f32 %v375, %v427
        %v443 = vmul.f32 %v378, %v427
        %v444 = vmul.f32 %v381, %v427
        %v445 = vmul.f32 %v384, %v427
        %v446 = vmul.f32 %v387, %v427
        %v447 = vmul.f32 %v390, %v427
        %v448 = vmul.f32 %v393, %v427
        %v449 = vmul.f32 %v396, %v427
        %v450 = vmul.f32 %v399, %v427
        %v451 = vmul.f32 %v402, %v427
        %v452 = vmul.f32 %v405, %v427
        %v453 = vmul.f32 %v408, %v427
        %v454 = vmul.f32 %v411, %v427
        %v455 = vmul.f32 %v414, %v427
        %v456 = vmul.f32 %v417, %v427
        %v457 = vmul.f32 %v420, %v427
        %v458 = vmul.f32 %v423, %v427
        %v459 = vmul.f32 %v426, %v427
        %v460 = vsub.f32 %v298, %v428
        %v461 = vsub.f32 %v299, %v429
        %v462 = vsub.f32 %v300, %v430
        %v463 = vsub.f32 %v301, %v431
        %v464 = vsub.f32 %v302, %v432
        %v465 = vsub.f32 %v303, %v433
        %v466 = vsub.f32 %v304, %v434
        %v467 = vsub.f32 %v305, %v435
        %v468 = vsub.f32 %v306, %v436
        %v469 = vsub.f32 %v307, %v437
        %v470 = vsub.f32 %v308, %v438
        %v471 = vsub.f32 %v309, %v439
        %v472 = vsub.f32 %v310, %v440
        %v473 = vsub.f32 %v311, %v441
        %v474 = vsub.f32 %v312, %v442
        %v475 = vsub.f32 %v313, %v443
        %v476 = vsub.f32 %v314, %v444
        %v477 = vsub.f32 %v315, %v445
        %v478 = vsub.f32 %v316, %v446
        %v479 = vsub.f32 %v317, %v447
        %v480 = vsub.f32 %v318, %v448
        %v481 = vsub.f32 %v319, %v449
        %v482 = vsub.f32 %v320, %v450
        %v483 = vsub.f32 %v321, %v451
        %v484 = vsub.f32 %v322, %v452
        %v485 = vsub.f32 %v323, %v453
        %v486 = vsub.f32 %v324, %v454
        %v487 = vsub.f32 %v325, %v455
        %v488 = vsub.f32 %v326, %v456
        %v489 = vsub.f32 %v327, %v457
        %v490 = vsub.f32 %v328, %v458
        %v491 = vsub.f32 %v329, %v459
        %v492 = vmul.f32 %v460, %v460
        %v493 = vmul.f32 %v461, %v461
        %v494 = vmul.f32 %v462, %v462
        %v495 = vmul.f32 %v463, %v463
        %v496 = vmul.f32 %v464, %v464
        %v497 = vmul.f32 %v465, %v465
        %v498 = vmul.f32 %v466, %v466
        %v499 = vmul.f32 %v467, %v467
        %v500 = vmul.f32 %v468, %v468
        %v501 = vmul.f32 %v469, %v469
        %v502 = vmul.f32 %v470, %v470
        %v503 = vmul.f32 %v471, %v471
        %v504 = vmul.f32 %v472, %v472
        %v505 = vmul.f32 %v473, %v473
        %v506 = vmul.f32 %v474, %v474
        %v507 = vmul.f32 %v475, %v475
        %v508 = vmul.f32 %v476, %v476
        %v509 = vmul.f32 %v477, %v477
        %v510 = vmul.f32 %v478, %v478
        %v511 = vmul.f32 %v479, %v479
        %v512 = vmul.f32 %v480, %v480
        %v513 = vmul.f32 %v481, %v481
        %v514 = vmul.f32 %v482, %v482
        %v515 = vmul.f32 %v483, %v483
        %v516 = vmul.f32 %v484, %v484
        %v517 = vmul.f32 %v485, %v485
        %v518 = vmul.f32 %v486, %v486
        %v519 = vmul.f32 %v487, %v487
        %v520 = vmul.f32 %v488, %v488
        %v521 = vmul.f32 %v489, %v489
        %v522 = vmul.f32 %v490, %v490
        %v523 = vmul.f32 %v491, %v491
        %v524 = vsel %vm330, %v492, 0.0
        %525 = vadd.xlane.f32.xlu0 %v524
        %v526 = vpop.xlane.xlu0 %525
        %v527 = vsel %vm330, %v493, 0.0
        %528 = vadd.xlane.f32.xlu0 %v527
        %v529 = vpop.xlane.xlu0 %528
        %v530 = vsel %vm330, %v494, 0.0
        %531 = vadd.xlane.f32.xlu0 %v530
        %v532 = vpop.xlane.xlu0 %531
        %v533 = vsel %vm330, %v495, 0.0
        %534 = vadd.xlane.f32.xlu0 %v533
        %v535 = vpop.xlane.xlu0 %534
        %v536 = vsel %vm330, %v496, 0.0
        %537 = vadd.xlane.f32.xlu0 %v536
        %v538 = vpop.xlane.xlu0 %537
        %v539 = vsel %vm330, %v497, 0.0
        %540 = vadd.xlane.f32.xlu0 %v539
        %v541 = vpop.xlane.xlu0 %540
        %v542 = vsel %vm330, %v498, 0.0
        %543 = vadd.xlane.f32.xlu0 %v542
        %v544 = vpop.xlane.xlu0 %543
        %v545 = vsel %vm330, %v499, 0.0
        %546 = vadd.xlane.f32.xlu0 %v545
        %v547 = vpop.xlane.xlu0 %546
        %v548 = vsel %vm330, %v500, 0.0
        %549 = vadd.xlane.f32.xlu0 %v548
        %v550 = vpop.xlane.xlu0 %549
        %v551 = vsel %vm330, %v501, 0.0
        %552 = vadd.xlane.f32.xlu0 %v551
        %v553 = vpop.xlane.xlu0 %552
        %v554 = vsel %vm330, %v502, 0.0
        %555 = vadd.xlane.f32.xlu0 %v554
        %v556 = vpop.xlane.xlu0 %555
        %v557 = vsel %vm330, %v503, 0.0
        %558 = vadd.xlane.f32.xlu0 %v557
        %v559 = vpop.xlane.xlu0 %558
        %v560 = vsel %vm330, %v504, 0.0
        %561 = vadd.xlane.f32.xlu0 %v560
        %v562 = vpop.xlane.xlu0 %561
        %v563 = vsel %vm330, %v505, 0.0
        %564 = vadd.xlane.f32.xlu0 %v563
        %v565 = vpop.xlane.xlu0 %564
        %v566 = vsel %vm330, %v506, 0.0
        %567 = vadd.xlane.f32.xlu0 %v566
        %v568 = vpop.xlane.xlu0 %567
        %v569 = vsel %vm330, %v507, 0.0
        %570 = vadd.xlane.f32.xlu0 %v569
        %v571 = vpop.xlane.xlu0 %570
        %v572 = vsel %vm330, %v508, 0.0
        %573 = vadd.xlane.f32.xlu0 %v572
        %v574 = vpop.xlane.xlu0 %573
        %v575 = vsel %vm330, %v509, 0.0
        %576 = vadd.xlane.f32.xlu0 %v575
        %v577 = vpop.xlane.xlu0 %576
        %v578 = vsel %vm330, %v510, 0.0
        %579 = vadd.xlane.f32.xlu0 %v578
        %v580 = vpop.xlane.xlu0 %579
        %v581 = vsel %vm330, %v511, 0.0
        %582 = vadd.xlane.f32.xlu0 %v581
        %v583 = vpop.xlane.xlu0 %582
        %v584 = vsel %vm330, %v512, 0.0
        %585 = vadd.xlane.f32.xlu0 %v584
        %v586 = vpop.xlane.xlu0 %585
        %v587 = vsel %vm330, %v513, 0.0
        %588 = vadd.xlane.f32.xlu0 %v587
        %v589 = vpop.xlane.xlu0 %588
        %v590 = vsel %vm330, %v514, 0.0
        %591 = vadd.xlane.f32.xlu0 %v590
        %v592 = vpop.xlane.xlu0 %591
        %v593 = vsel %vm330, %v515, 0.0
        %594 = vadd.xlane.f32.xlu0 %v593
        %v595 = vpop.xlane.xlu0 %594
        %v596 = vsel %vm330, %v516, 0.0
        %597 = vadd.xlane.f32.xlu0 %v596
        %v598 = vpop.xlane.xlu0 %597
        %v599 = vsel %vm330, %v517, 0.0
        %600 = vadd.xlane.f32.xlu0 %v599
        %v601 = vpop.xlane.xlu0 %600
        %v602 = vsel %vm330, %v518, 0.0
        %603 = vadd.xlane.f32.xlu0 %v602
        %v604 = vpop.xlane.xlu0 %603
        %v605 = vsel %vm330, %v519, 0.0
        %606 = vadd.xlane.f32.xlu0 %v605
        %v607 = vpop.xlane.xlu0 %606
        %v608 = vsel %vm330, %v520, 0.0
        %609 = vadd.xlane.f32.xlu0 %v608
        %v610 = vpop.xlane.xlu0 %609
        %v611 = vsel %vm330, %v521, 0.0
        %612 = vadd.xlane.f32.xlu0 %v611
        %v613 = vpop.xlane.xlu0 %612
        %v614 = vsel %vm330, %v522, 0.0
        %615 = vadd.xlane.f32.xlu0 %v614
        %v616 = vpop.xlane.xlu0 %615
        %v617 = vsel %vm330, %v523, 0.0
        %618 = vadd.xlane.f32.xlu0 %v617
        %v619 = vpop.xlane.xlu0 %618
        %v620 = vmul.f32 %v526, %v427
        %v621 = vmul.f32 %v529, %v427
        %v622 = vmul.f32 %v532, %v427
        %v623 = vmul.f32 %v535, %v427
        %v624 = vmul.f32 %v538, %v427
        %v625 = vmul.f32 %v541, %v427
        %v626 = vmul.f32 %v544, %v427
        %v627 = vmul.f32 %v547, %v427
        %v628 = vmul.f32 %v550, %v427
        %v629 = vmul.f32 %v553, %v427
        %v630 = vmul.f32 %v556, %v427
        %v631 = vmul.f32 %v559, %v427
        %v632 = vmul.f32 %v562, %v427
        %v633 = vmul.f32 %v565, %v427
        %v634 = vmul.f32 %v568, %v427
        %v635 = vmul.f32 %v571, %v427
        %v636 = vmul.f32 %v574, %v427
        %v637 = vmul.f32 %v577, %v427
        %v638 = vmul.f32 %v580, %v427
        %v639 = vmul.f32 %v583, %v427
        %v640 = vmul.f32 %v586, %v427
        %v641 = vmul.f32 %v589, %v427
        %v642 = vmul.f32 %v592, %v427
        %v643 = vmul.f32 %v595, %v427
        %v644 = vmul.f32 %v598, %v427
        %v645 = vmul.f32 %v601, %v427
        %v646 = vmul.f32 %v604, %v427
        %v647 = vmul.f32 %v607, %v427
        %v648 = vmul.f32 %v610, %v427
        %v649 = vmul.f32 %v613, %v427
        %v650 = vmul.f32 %v616, %v427
        %v651 = vmul.f32 %v619, %v427
        %v652 = vadd.f32 %v620, 1e-06
        %v653 = vadd.f32 %v621, 1e-06
        %v654 = vadd.f32 %v622, 1e-06
        %v655 = vadd.f32 %v623, 1e-06
        %v656 = vadd.f32 %v624, 1e-06
        %v657 = vadd.f32 %v625, 1e-06
        %v658 = vadd.f32 %v626, 1e-06
        %v659 = vadd.f32 %v627, 1e-06
        %v660 = vadd.f32 %v628, 1e-06
        %v661 = vadd.f32 %v629, 1e-06
        %v662 = vadd.f32 %v630, 1e-06
        %v663 = vadd.f32 %v631, 1e-06
        %v664 = vadd.f32 %v632, 1e-06
        %v665 = vadd.f32 %v633, 1e-06
        %v666 = vadd.f32 %v634, 1e-06
        %v667 = vadd.f32 %v635, 1e-06
        %v668 = vadd.f32 %v636, 1e-06
        %v669 = vadd.f32 %v637, 1e-06
        %v670 = vadd.f32 %v638, 1e-06
        %v671 = vadd.f32 %v639, 1e-06
        %v672 = vadd.f32 %v640, 1e-06
        %v673 = vadd.f32 %v641, 1e-06
        %v674 = vadd.f32 %v642, 1e-06
        %v675 = vadd.f32 %v643, 1e-06
        %v676 = vadd.f32 %v644, 1e-06
        %v677 = vadd.f32 %v645, 1e-06
        %v678 = vadd.f32 %v646, 1e-06
        %v679 = vadd.f32 %v647, 1e-06
        %v680 = vadd.f32 %v648, 1e-06
        %v681 = vadd.f32 %v649, 1e-06
        %v682 = vadd.f32 %v650, 1e-06
        %v683 = vadd.f32 %v651, 1e-06
        %v684 = vrsqrt.pop %v652
        %v685 = vrsqrt.pop %v653
        %v686 = vrsqrt.pop %v654
        %v687 = vrsqrt.pop %v655
        %v688 = vrsqrt.pop %v656
        %v689 = vrsqrt.pop %v657
        %v690 = vrsqrt.pop %v658
        %v691 = vrsqrt.pop %v659
        %v692 = vrsqrt.pop %v660
        %v693 = vrsqrt.pop %v661
        %v694 = vrsqrt.pop %v662
        %v695 = vrsqrt.pop %v663
        %v696 = vrsqrt.pop %v664
        %v697 = vrsqrt.pop %v665
        %v698 = vrsqrt.pop %v666
        %v699 = vrsqrt.pop %v667
        %v700 = vrsqrt.pop %v668
        %v701 = vrsqrt.pop %v669
        %v702 = vrsqrt.pop %v670
        %v703 = vrsqrt.pop %v671
        %v704 = vrsqrt.pop %v672
        %v705 = vrsqrt.pop %v673
        %v706 = vrsqrt.pop %v674
        %v707 = vrsqrt.pop %v675
        %v708 = vrsqrt.pop %v676
        %v709 = vrsqrt.pop %v677
        %v710 = vrsqrt.pop %v678
        %v711 = vrsqrt.pop %v679
        %v712 = vrsqrt.pop %v680
        %v713 = vrsqrt.pop %v681
        %v714 = vrsqrt.pop %v682
        %v715 = vrsqrt.pop %v683
        %v716 = vmul.f32 %v460, %v684
        %v717 = vmul.f32 %v461, %v685
        %v718 = vmul.f32 %v462, %v686
        %v719 = vmul.f32 %v463, %v687
        %v720 = vmul.f32 %v464, %v688
        %v721 = vmul.f32 %v465, %v689
        %v722 = vmul.f32 %v466, %v690
        %v723 = vmul.f32 %v467, %v691
        %v724 = vmul.f32 %v468, %v692
        %v725 = vmul.f32 %v469, %v693
        %v726 = vmul.f32 %v470, %v694
        %v727 = vmul.f32 %v471, %v695
        %v728 = vmul.f32 %v472, %v696
        %v729 = vmul.f32 %v473, %v697
        %v730 = vmul.f32 %v474, %v698
        %v731 = vmul.f32 %v475, %v699
        %v732 = vmul.f32 %v476, %v700
        %v733 = vmul.f32 %v477, %v701
        %v734 = vmul.f32 %v478, %v702
        %v735 = vmul.f32 %v479, %v703
        %v736 = vmul.f32 %v480, %v704
        %v737 = vmul.f32 %v481, %v705
        %v738 = vmul.f32 %v482, %v706
        %v739 = vmul.f32 %v483, %v707
        %v740 = vmul.f32 %v484, %v708
        %v741 = vmul.f32 %v485, %v709
        %v742 = vmul.f32 %v486, %v710
        %v743 = vmul.f32 %v487, %v711
        %v744 = vmul.f32 %v488, %v712
        %v745 = vmul.f32 %v489, %v713
        %v746 = vmul.f32 %v490, %v714
        %v747 = vmul.f32 %v491, %v715
        %v748 = vpack.c.bf16 %v717, %v716
        %v749 = vpack.c.bf16 %v719, %v718
        %v750 = vpack.c.bf16 %v721, %v720
        %v751 = vpack.c.bf16 %v723, %v722
        %v752 = vpack.c.bf16 %v725, %v724
        %v753 = vpack.c.bf16 %v727, %v726
        %v754 = vpack.c.bf16 %v729, %v728
        %v755 = vpack.c.bf16 %v731, %v730
        %v756 = vpack.c.bf16 %v733, %v732
        %v757 = vpack.c.bf16 %v735, %v734
        %v758 = vpack.c.bf16 %v737, %v736
        %v759 = vpack.c.bf16 %v739, %v738
        %v760 = vpack.c.bf16 %v741, %v740
        %v761 = vpack.c.bf16 %v743, %v742
        %v762 = vpack.c.bf16 %v745, %v744
        %v763 = vpack.c.bf16 %v747, %v746
        %764 = vst.msk [vmem:[#allocation2] sm:$0xff] %vm330, %v748
        %765 = vst.msk [vmem:[#allocation2 + $0x8] sm:$0xff] %vm330, %v749
        %766 = vst.msk [vmem:[#allocation2 + $0x10] sm:$0xff] %vm330, %v750
        %767 = vst.msk [vmem:[#allocation2 + $0x18] sm:$0xff] %vm330, %v751
        %768 = vst.msk [vmem:[#allocation2 + $0x20] sm:$0xff] %vm330, %v752
        %769 = vst.msk [vmem:[#allocation2 + $0x28] sm:$0xff] %vm330, %v753
        %770 = vst.msk [vmem:[#allocation2 + $0x30] sm:$0xff] %vm330, %v754
        %771 = vst.msk [vmem:[#allocation2 + $0x38] sm:$0xff] %vm330, %v755
        %772 = vst.msk [vmem:[#allocation2 + $0x40] sm:$0xff] %vm330, %v756
        %773 = vst.msk [vmem:[#allocation2 + $0x48] sm:$0xff] %vm330, %v757
        %774 = vst.msk [vmem:[#allocation2 + $0x50] sm:$0xff] %vm330, %v758
        %775 = vst.msk [vmem:[#allocation2 + $0x58] sm:$0xff] %vm330, %v759
        %776 = vst.msk [vmem:[#allocation2 + $0x60] sm:$0xff] %vm330, %v760
        %777 = vst.msk [vmem:[#allocation2 + $0x68] sm:$0xff] %vm330, %v761
        %778 = vst.msk [vmem:[#allocation2 + $0x70] sm:$0xff] %vm330, %v762
        %779 = vst.msk [vmem:[#allocation2 + $0x78] sm:$0xff] %vm330, %v763
        %780 = vst.msk [vmem:[#allocation3] sm:$0xff] %vm330, 0.0
        %781 = vst.msk [vmem:[#allocation3 + $0x8] sm:$0xff] %vm330, 0.0
        %782 = vst.msk [vmem:[#allocation3 + $0x10] sm:$0xff] %vm330, 0.0
        %783 = vst.msk [vmem:[#allocation3 + $0x18] sm:$0xff] %vm330, 0.0
        %784 = vst.msk [vmem:[#allocation3 + $0x20] sm:$0xff] %vm330, 0.0
        %785 = vst.msk [vmem:[#allocation3 + $0x28] sm:$0xff] %vm330, 0.0
        %786 = vst.msk [vmem:[#allocation3 + $0x30] sm:$0xff] %vm330, 0.0
        %787 = vst.msk [vmem:[#allocation3 + $0x38] sm:$0xff] %vm330, 0.0
        %788 = vst.msk [vmem:[#allocation3 + $0x40] sm:$0xff] %vm330, 0.0
        %789 = vst.msk [vmem:[#allocation3 + $0x48] sm:$0xff] %vm330, 0.0
        %790 = vst.msk [vmem:[#allocation3 + $0x50] sm:$0xff] %vm330, 0.0
        %791 = vst.msk [vmem:[#allocation3 + $0x58] sm:$0xff] %vm330, 0.0
        %792 = vst.msk [vmem:[#allocation3 + $0x60] sm:$0xff] %vm330, 0.0
        %793 = vst.msk [vmem:[#allocation3 + $0x68] sm:$0xff] %vm330, 0.0
        %794 = vst.msk [vmem:[#allocation3 + $0x70] sm:$0xff] %vm330, 0.0
        %795 = vst.msk [vmem:[#allocation3 + $0x78] sm:$0xff] %vm330, 0.0
        %796 = vst.msk [vmem:[#allocation3 + $0x80] sm:$0xff] %vm330, 0.0
        %797 = vst.msk [vmem:[#allocation3 + $0x88] sm:$0xff] %vm330, 0.0
        %798 = vst.msk [vmem:[#allocation3 + $0x90] sm:$0xff] %vm330, 0.0
        %799 = vst.msk [vmem:[#allocation3 + $0x98] sm:$0xff] %vm330, 0.0
        %800 = vst.msk [vmem:[#allocation3 + $0xa0] sm:$0xff] %vm330, 0.0
        %801 = vst.msk [vmem:[#allocation3 + $0xa8] sm:$0xff] %vm330, 0.0
        %802 = vst.msk [vmem:[#allocation3 + $0xb0] sm:$0xff] %vm330, 0.0
        %803 = vst.msk [vmem:[#allocation3 + $0xb8] sm:$0xff] %vm330, 0.0
        %804 = vst.msk [vmem:[#allocation3 + $0xc0] sm:$0xff] %vm330, 0.0
        %805 = vst.msk [vmem:[#allocation3 + $0xc8] sm:$0xff] %vm330, 0.0
        %806 = vst.msk [vmem:[#allocation3 + $0xd0] sm:$0xff] %vm330, 0.0
        %807 = vst.msk [vmem:[#allocation3 + $0xd8] sm:$0xff] %vm330, 0.0
        %808 = vst.msk [vmem:[#allocation3 + $0xe0] sm:$0xff] %vm330, 0.0
        %809 = vst.msk [vmem:[#allocation3 + $0xe8] sm:$0xff] %vm330, 0.0
        %810 = vst.msk [vmem:[#allocation3 + $0xf0] sm:$0xff] %vm330, 0.0
        %811 = vst.msk [vmem:[#allocation3 + $0xf8] sm:$0xff] %vm330, 0.0
      $region44: #{_mlp_residual_branch_impl.1} parent=39 // pred_fallthru
        _
      %v812 = vld [vmem:[#allocation2] sm:$0xff]
      %v813 = vld [vmem:[#allocation2 + $0x8] sm:$0xff]
      %v814 = vld [vmem:[#allocation2 + $0x10] sm:$0xff]
      %v815 = vld [vmem:[#allocation2 + $0x18] sm:$0xff]
      %v816 = vld [vmem:[#allocation2 + $0x20] sm:$0xff]
      %v817 = vld [vmem:[#allocation2 + $0x28] sm:$0xff]
      %v818 = vld [vmem:[#allocation2 + $0x30] sm:$0xff]
      %v819 = vld [vmem:[#allocation2 + $0x38] sm:$0xff]
      %v820 = vld [vmem:[#allocation2 + $0x40] sm:$0xff]
      %v821 = vld [vmem:[#allocation2 + $0x48] sm:$0xff]
      %v822 = vld [vmem:[#allocation2 + $0x50] sm:$0xff]
      %v823 = vld [vmem:[#allocation2 + $0x58] sm:$0xff]
      %v824 = vld [vmem:[#allocation2 + $0x60] sm:$0xff]
      %v825 = vld [vmem:[#allocation2 + $0x68] sm:$0xff]
      %v826 = vld [vmem:[#allocation2 + $0x70] sm:$0xff]
      %v827 = vld [vmem:[#allocation2 + $0x78] sm:$0xff]
      %v828 = vld [vmem:[%s277] sm:$0x3]
      %v829 = vld [vmem:[%s280] sm:$0x1]
      %v831 = vlaneseq
      %v832 = vshrl.u32 %v831, 7
      %v833 = vsub.s32 0, %v832
      %v834 = vrot.slane %v829, %v833
      %vm836 = vcmask 31744
      %v838 = vsel %vm836, %v812, 0
      %v841 = vsel %vm836, %v813, 0
      %v844 = vsel %vm836, %v814, 0
      %v847 = vsel %vm836, %v815, 0
      %v850 = vsel %vm836, %v816, 0
      %v853 = vsel %vm836, %v817, 0
      %v856 = vsel %vm836, %v818, 0
      %v859 = vsel %vm836, %v819, 0
      %v862 = vsel %vm836, %v820, 0
      %v865 = vsel %vm836, %v821, 0
      %v868 = vsel %vm836, %v822, 0
      %v871 = vsel %vm836, %v823, 0
      %v874 = vsel %vm836, %v824, 0
      %v877 = vsel %vm836, %v825, 0
      %v880 = vsel %vm836, %v826, 0
      %v883 = vsel %vm836, %v827, 0
      %vm885 = vcmask 1041408
      %v887 = vsel %vm885, %v828, 0
      %889 = vmatprep.subr.bf16.mxu0 0
      %890 = vmatpush1.bf16.msra.mxu0 %v887
      %891 = vmatprep.subr.bf16.mxu0 0
      %892 = vmatpush1.bf16.msra.mxu0 0
      %893 = vmatprep.subr.bf16.mxu0 0
      %894 = vmatpush1.bf16.msra.mxu0 0
      %895 = vmatprep.subr.bf16.mxu0 0
      %896 = vmatpush1.bf16.msra.mxu0 0
      %897 = vmatprep.subr.bf16.mxu0 0
      %898 = vmatpush1.bf16.msra.mxu0 0
      %899 = vmatprep.subr.bf16.mxu0 0
      %900 = vmatpush1.bf16.msra.mxu0 0
      %901 = vmatprep.subr.bf16.mxu0 0
      %902 = vmatpush1.bf16.msra.mxu0 0
      %903 = vmatprep.subr.bf16.mxu0 0
      %904 = vmatpush1.bf16.msra.mxu0 0
      %905 = vmatprep.subr.bf16.mxu0 0
      %906 = vmatpush1.bf16.msra.mxu0 0
      %907 = vmatprep.subr.bf16.mxu0 0
      %908 = vmatpush1.bf16.msra.mxu0 0
      %909 = vmatprep.subr.bf16.mxu0 0
      %910 = vmatpush1.bf16.msra.mxu0 0
      %911 = vmatprep.subr.bf16.mxu0 0
      %912 = vmatpush1.bf16.msra.mxu0 0
      %913 = vmatprep.subr.bf16.mxu0 0
      %914 = vmatpush1.bf16.msra.mxu0 0
      %915 = vmatprep.subr.bf16.mxu0 0
      %916 = vmatpush1.bf16.msra.mxu0 0
      %917 = vmatprep.subr.bf16.mxu0 0
      %918 = vmatpush1.bf16.msra.mxu0 0
      %919 = vmatprep.subr.bf16.mxu0 0
      %920 = vmatpush1.bf16.msra.mxu0 0
      %921 = vmatprep.mubr.bf16.mxu0 0
      %922 = vmatmul.mubr.bf16.gmra.mrb[0].mxu0 %v838
      %v923 = vpop.f32.mrb[0].mxu0
      %v924 = vadd.f32 %v834, %v923
      %v925 = vpop.f32.mrb[0].mxu0
      %v926 = vpop.f32.mrb[0].mxu0
      %v927 = vadd.f32 %v834, %v926
      %v928 = vpop.f32.mrb[0].mxu0
      %929 = vmatprep.mubr.bf16.mxu0 0
      %930 = vmatmul.mubr.bf16.gmra.mrb[0].mxu0 %v841
      %v931 = vpop.f32.mrb[0].mxu0
      %v932 = vadd.f32 %v834, %v931
      %v933 = vpop.f32.mrb[0].mxu0
      %v934 = vpop.f32.mrb[0].mxu0
      %v935 = vadd.f32 %v834, %v934
      %v936 = vpop.f32.mrb[0].mxu0
      %937 = vmatprep.mubr.bf16.mxu0 0
      %938 = vmatmul.mubr.bf16.gmra.mrb[0].mxu0 %v844
      %v939 = vpop.f32.mrb[0].mxu0
      %v940 = vadd.f32 %v834, %v939
      %v941 = vpop.f32.mrb[0].mxu0
      %v942 = vpop.f32.mrb[0].mxu0
      %v943 = vadd.f32 %v834, %v942
      %v944 = vpop.f32.mrb[0].mxu0
      %945 = vmatprep.mubr.bf16.mxu0 0
      %946 = vmatmul.mubr.bf16.gmra.mrb[0].mxu0 %v847
      %v947 = vpop.f32.mrb[0].mxu0
      %v948 = vadd.f32 %v834, %v947
      %v949 = vpop.f32.mrb[0].mxu0
      %v950 = vpop.f32.mrb[0].mxu0
      %v951 = vadd.f32 %v834, %v950
      %v952 = vpop.f32.mrb[0].mxu0
      %953 = vmatprep.mubr.bf16.mxu0 0
      %954 = vmatmul.mubr.bf16.gmra.mrb[0].mxu0 %v850
      %v955 = vpop.f32.mrb[0].mxu0
      %v956 = vadd.f32 %v834, %v955
      %v957 = vpop.f32.mrb[0].mxu0
      %v958 = vpop.f32.mrb[0].mxu0
      %v959 = vadd.f32 %v834, %v958
      %v960 = vpop.f32.mrb[0].mxu0
      %961 = vmatprep.mubr.bf16.mxu0 0
      %962 = vmatmul.mubr.bf16.gmra.mrb[0].mxu0 %v853
      %v963 = vpop.f32.mrb[0].mxu0
      %v964 = vadd.f32 %v834, %v963
      %v965 = vpop.f32.mrb[0].mxu0
      %v966 = vpop.f32.mrb[0].mxu0
      %v967 = vadd.f32 %v834, %v966
      %v968 = vpop.f32.mrb[0].mxu0
      %969 = vmatprep.mubr.bf16.mxu0 0
      %970 = vmatmul.mubr.bf16.gmra.mrb[0].mxu0 %v856
      %v971 = vpop.f32.mrb[0].mxu0
      %v972 = vadd.f32 %v834, %v971
      %v973 = vpop.f32.mrb[0].mxu0
      %v974 = vpop.f32.mrb[0].mxu0
      %v975 = vadd.f32 %v834, %v974
      %v976 = vpop.f32.mrb[0].mxu0
      %977 = vmatprep.mubr.bf16.mxu0 0
      %978 = vmatmul.mubr.bf16.gmra.mrb[0].mxu0 %v859
      %v979 = vpop.f32.mrb[0].mxu0
      %v980 = vadd.f32 %v834, %v979
      %v981 = vpop.f32.mrb[0].mxu0
      %v982 = vpop.f32.mrb[0].mxu0
      %v983 = vadd.f32 %v834, %v982
      %v984 = vpop.f32.mrb[0].mxu0
      %985 = vmatprep.mubr.bf16.mxu0 0
      %986 = vmatmul.mubr.bf16.gmra.mrb[0].mxu0 %v862
      %v987 = vpop.f32.mrb[0].mxu0
      %v988 = vadd.f32 %v834, %v987
      %v989 = vpop.f32.mrb[0].mxu0
      %v990 = vpop.f32.mrb[0].mxu0
      %v991 = vadd.f32 %v834, %v990
      %v992 = vpop.f32.mrb[0].mxu0
      %993 = vmatprep.mubr.bf16.mxu0 0
      %994 = vmatmul.mubr.bf16.gmra.mrb[0].mxu0 %v865
      %v995 = vpop.f32.mrb[0].mxu0
      %v996 = vadd.f32 %v834, %v995
      %v997 = vpop.f32.mrb[0].mxu0
      %v998 = vpop.f32.mrb[0].mxu0
      %v999 = vadd.f32 %v834, %v998
      %v1000 = vpop.f32.mrb[0].mxu0
      %1001 = vmatprep.mubr.bf16.mxu0 0
      %1002 = vmatmul.mubr.bf16.gmra.mrb[0].mxu0 %v868
      %v1003 = vpop.f32.mrb[0].mxu0
      %v1004 = vadd.f32 %v834, %v1003
      %v1005 = vpop.f32.mrb[0].mxu0
      %v1006 = vpop.f32.mrb[0].mxu0
      %v1007 = vadd.f32 %v834, %v1006
      %v1008 = vpop.f32.mrb[0].mxu0
      %1009 = vmatprep.mubr.bf16.mxu0 0
      %1010 = vmatmul.mubr.bf16.gmra.mrb[0].mxu0 %v871
      %v1011 = vpop.f32.mrb[0].mxu0
      %v1012 = vadd.f32 %v834, %v1011
      %v1013 = vpop.f32.mrb[0].mxu0
      %v1014 = vpop.f32.mrb[0].mxu0
      %v1015 = vadd.f32 %v834, %v1014
      %v1016 = vpop.f32.mrb[0].mxu0
      %1017 = vmatprep.mubr.bf16.mxu0 0
      %1018 = vmatmul.mubr.bf16.gmra.mrb[0].mxu0 %v874
      %v1019 = vpop.f32.mrb[0].mxu0
      %v1020 = vadd.f32 %v834, %v1019
      %v1021 = vpop.f32.mrb[0].mxu0
      %v1022 = vpop.f32.mrb[0].mxu0
      %v1023 = vadd.f32 %v834, %v1022
      %v1024 = vpop.f32.mrb[0].mxu0
      %1025 = vmatprep.mubr.bf16.mxu0 0
      %1026 = vmatmul.mubr.bf16.gmra.mrb[0].mxu0 %v877
      %v1027 = vpop.f32.mrb[0].mxu0
      %v1028 = vadd.f32 %v834, %v1027
      %v1029 = vpop.f32.mrb[0].mxu0
      %v1030 = vpop.f32.mrb[0].mxu0
      %v1031 = vadd.f32 %v834, %v1030
      %v1032 = vpop.f32.mrb[0].mxu0
      %1033 = vmatprep.mubr.bf16.mxu0 0
      %1034 = vmatmul.mubr.bf16.gmra.mrb[0].mxu0 %v880
      %v1035 = vpop.f32.mrb[0].mxu0
      %v1036 = vadd.f32 %v834, %v1035
      %v1037 = vpop.f32.mrb[0].mxu0
      %v1038 = vpop.f32.mrb[0].mxu0
      %v1039 = vadd.f32 %v834, %v1038
      %v1040 = vpop.f32.mrb[0].mxu0
      %1041 = vmatprep.mubr.bf16.mxu0 0
      %1042 = vmatmul.mubr.bf16.gmra.mrb[0].mxu0 %v883
      %v1043 = vpop.f32.mrb[0].mxu0
      %v1044 = vadd.f32 %v834, %v1043
      %v1045 = vpop.f32.mrb[0].mxu0
      %v1046 = vpop.f32.mrb[0].mxu0
      %v1047 = vadd.f32 %v834, %v1046
      %v1048 = vpop.f32.mrb[0].mxu0
      %1049 = vdwg.mxu0
      %v1050 = vmul.f32 %v924, %v924
      %v1051 = vmul.f32 %v927, %v927
      %v1052 = vmul.f32 %v932, %v932
      %v1053 = vmul.f32 %v935, %v935
      %v1054 = vmul.f32 %v940, %v940
      %v1055 = vmul.f32 %v943, %v943
      %v1056 = vmul.f32 %v948, %v948
      %v1057 = vmul.f32 %v951, %v951
      %v1058 = vmul.f32 %v956, %v956
      %v1059 = vmul.f32 %v959, %v959
      %v1060 = vmul.f32 %v964, %v964
      %v1061 = vmul.f32 %v967, %v967
      %v1062 = vmul.f32 %v972, %v972
      %v1063 = vmul.f32 %v975, %v975
      %v1064 = vmul.f32 %v980, %v980
      %v1065 = vmul.f32 %v983, %v983
      %v1066 = vmul.f32 %v988, %v988
      %v1067 = vmul.f32 %v991, %v991
      %v1068 = vmul.f32 %v996, %v996
      %v1069 = vmul.f32 %v999, %v999
      %v1070 = vmul.f32 %v1004, %v1004
      %v1071 = vmul.f32 %v1007, %v1007
      %v1072 = vmul.f32 %v1012, %v1012
      %v1073 = vmul.f32 %v1015, %v1015
      %v1074 = vmul.f32 %v1020, %v1020
      %v1075 = vmul.f32 %v1023, %v1023
      %v1076 = vmul.f32 %v1028, %v1028
      %v1077 = vmul.f32 %v1031, %v1031
      %v1078 = vmul.f32 %v1036, %v1036
      %v1079 = vmul.f32 %v1039, %v1039
      %v1080 = vmul.f32 %v1044, %v1044
      %v1081 = vmul.f32 %v1047, %v1047
      %v1082 = vmul.f32 %v924, %v1050
      %v1083 = vmul.f32 %v927, %v1051
      %v1084 = vmul.f32 %v932, %v1052
      %v1085 = vmul.f32 %v935, %v1053
      %v1086 = vmul.f32 %v940, %v1054
      %v1087 = vmul.f32 %v943, %v1055
      %v1088 = vmul.f32 %v948, %v1056
      %v1089 = vmul.f32 %v951, %v1057
      %v1090 = vmul.f32 %v956, %v1058
      %v1091 = vmul.f32 %v959, %v1059
      %v1092 = vmul.f32 %v964, %v1060
      %v1093 = vmul.f32 %v967, %v1061
      %v1094 = vmul.f32 %v972, %v1062
      %v1095 = vmul.f32 %v975, %v1063
      %v1096 = vmul.f32 %v980, %v1064
      %v1097 = vmul.f32 %v983, %v1065
      %v1098 = vmul.f32 %v988, %v1066
      %v1099 = vmul.f32 %v991, %v1067
      %v1100 = vmul.f32 %v996, %v1068
      %v1101 = vmul.f32 %v999, %v1069
      %v1102 = vmul.f32 %v1004, %v1070
      %v1103 = vmul.f32 %v1007, %v1071
      %v1104 = vmul.f32 %v1012, %v1072
      %v1105 = vmul.f32 %v1015, %v1073
      %v1106 = vmul.f32 %v1020, %v1074
      %v1107 = vmul.f32 %v1023, %v1075
      %v1108 = vmul.f32 %v1028, %v1076
      %v1109 = vmul.f32 %v1031, %v1077
      %v1110 = vmul.f32 %v1036, %v1078
      %v1111 = vmul.f32 %v1039, %v1079
      %v1112 = vmul.f32 %v1044, %v1080
      %v1113 = vmul.f32 %v1047, %v1081
      %v1114 = vmul.f32 %v1082, 0.044715
      %v1115 = vmul.f32 %v1083, 0.044715
      %v1116 = vmul.f32 %v1084, 0.044715
      %v1117 = vmul.f32 %v1085, 0.044715
      %v1118 = vmul.f32 %v1086, 0.044715
      %v1119 = vmul.f32 %v1087, 0.044715
      %v1120 = vmul.f32 %v1088, 0.044715
      %v1121 = vmul.f32 %v1089, 0.044715
      %v1122 = vmul.f32 %v1090, 0.044715
      %v1123 = vmul.f32 %v1091, 0.044715
      %v1124 = vmul.f32 %v1092, 0.044715
      %v1125 = vmul.f32 %v1093, 0.044715
      %v1126 = vmul.f32 %v1094, 0.044715
      %v1127 = vmul.f32 %v1095, 0.044715
      %v1128 = vmul.f32 %v1096, 0.044715
      %v1129 = vmul.f32 %v1097, 0.044715
      %v1130 = vmul.f32 %v1098, 0.044715
      %v1131 = vmul.f32 %v1099, 0.044715
      %v1132 = vmul.f32 %v1100, 0.044715
      %v1133 = vmul.f32 %v1101, 0.044715
      %v1134 = vmul.f32 %v1102, 0.044715
      %v1135 = vmul.f32 %v1103, 0.044715
      %v1136 = vmul.f32 %v1104, 0.044715
      %v1137 = vmul.f32 %v1105, 0.044715
      %v1138 = vmul.f32 %v1106, 0.044715
      %v1139 = vmul.f32 %v1107, 0.044715
      %v1140 = vmul.f32 %v1108, 0.044715
      %v1141 = vmul.f32 %v1109, 0.044715
      %v1142 = vmul.f32 %v1110, 0.044715
      %v1143 = vmul.f32 %v1111, 0.044715
      %v1144 = vmul.f32 %v1112, 0.044715
      %v1145 = vmul.f32 %v1113, 0.044715
      %v1146 = vadd.f32 %v924, %v1114
      %v1147 = vadd.f32 %v927, %v1115
      %v1148 = vadd.f32 %v932, %v1116
      %v1149 = vadd.f32 %v935, %v1117
      %v1150 = vadd.f32 %v940, %v1118
      %v1151 = vadd.f32 %v943, %v1119
      %v1152 = vadd.f32 %v948, %v1120
      %v1153 = vadd.f32 %v951, %v1121
      %v1154 = vadd.f32 %v956, %v1122
      %v1155 = vadd.f32 %v959, %v1123
      %v1156 = vadd.f32 %v964, %v1124
      %v1157 = vadd.f32 %v967, %v1125
      %v1158 = vadd.f32 %v972, %v1126
      %v1159 = vadd.f32 %v975, %v1127
      %v1160 = vadd.f32 %v980, %v1128
      %v1161 = vadd.f32 %v983, %v1129
      %v1162 = vadd.f32 %v988, %v1130
      %v1163 = vadd.f32 %v991, %v1131
      %v1164 = vadd.f32 %v996, %v1132
      %v1165 = vadd.f32 %v999, %v1133
      %v1166 = vadd.f32 %v1004, %v1134
      %v1167 = vadd.f32 %v1007, %v1135
      %v1168 = vadd.f32 %v1012, %v1136
      %v1169 = vadd.f32 %v1015, %v1137
      %v1170 = vadd.f32 %v1020, %v1138
      %v1171 = vadd.f32 %v1023, %v1139
      %v1172 = vadd.f32 %v1028, %v1140
      %v1173 = vadd.f32 %v1031, %v1141
      %v1174 = vadd.f32 %v1036, %v1142
      %v1175 = vadd.f32 %v1039, %v1143
      %v1176 = vadd.f32 %v1044, %v1144
      %v1177 = vadd.f32 %v1047, %v1145
      %v1178 = vmul.f32 %v1146, 0.7978846
      %v1179 = vmul.f32 %v1147, 0.7978846
      %v1180 = vmul.f32 %v1148, 0.7978846
      %v1181 = vmul.f32 %v1149, 0.7978846
      %v1182 = vmul.f32 %v1150, 0.7978846
      %v1183 = vmul.f32 %v1151, 0.7978846
      %v1184 = vmul.f32 %v1152, 0.7978846
      %v1185 = vmul.f32 %v1153, 0.7978846
      %v1186 = vmul.f32 %v1154, 0.7978846
      %v1187 = vmul.f32 %v1155, 0.7978846
      %v1188 = vmul.f32 %v1156, 0.7978846
      %v1189 = vmul.f32 %v1157, 0.7978846
      %v1190 = vmul.f32 %v1158, 0.7978846
      %v1191 = vmul.f32 %v1159, 0.7978846
      %v1192 = vmul.f32 %v1160, 0.7978846
      %v1193 = vmul.f32 %v1161, 0.7978846
      %v1194 = vmul.f32 %v1162, 0.7978846
      %v1195 = vmul.f32 %v1163, 0.7978846
      %v1196 = vmul.f32 %v1164, 0.7978846
      %v1197 = vmul.f32 %v1165, 0.7978846
      %v1198 = vmul.f32 %v1166, 0.7978846
      %v1199 = vmul.f32 %v1167, 0.7978846
      %v1200 = vmul.f32 %v1168, 0.7978846
      %v1201 = vmul.f32 %v1169, 0.7978846
      %v1202 = vmul.f32 %v1170, 0.7978846
      %v1203 = vmul.f32 %v1171, 0.7978846
      %v1204 = vmul.f32 %v1172, 0.7978846
      %v1205 = vmul.f32 %v1173, 0.7978846
      %v1206 = vmul.f32 %v1174, 0.7978846
      %v1207 = vmul.f32 %v1175, 0.7978846
      %v1208 = vmul.f32 %v1176, 0.7978846
      %v1209 = vmul.f32 %v1177, 0.7978846
      %v1210 = vtanh.pop %v1178
      %v1211 = vtanh.pop %v1179
      %v1212 = vtanh.pop %v1180
      %v1213 = vtanh.pop %v1181
      %v1214 = vtanh.pop %v1182
      %v1215 = vtanh.pop %v1183
      %v1216 = vtanh.pop %v1184
      %v1217 = vtanh.pop %v1185
      %v1218 = vtanh.pop %v1186
      %v1219 = vtanh.pop %v1187
      %v1220 = vtanh.pop %v1188
      %v1221 = vtanh.pop %v1189
      %v1222 = vtanh.pop %v1190
      %v1223 = vtanh.pop %v1191
      %v1224 = vtanh.pop %v1192
      %v1225 = vtanh.pop %v1193
      %v1226 = vtanh.pop %v1194
      %v1227 = vtanh.pop %v1195
      %v1228 = vtanh.pop %v1196
      %v1229 = vtanh.pop %v1197
      %v1230 = vtanh.pop %v1198
      %v1231 = vtanh.pop %v1199
      %v1232 = vtanh.pop %v1200
      %v1233 = vtanh.pop %v1201
      %v1234 = vtanh.pop %v1202
      %v1235 = vtanh.pop %v1203
      %v1236 = vtanh.pop %v1204
      %v1237 = vtanh.pop %v1205
      %v1238 = vtanh.pop %v1206
      %v1239 = vtanh.pop %v1207
      %v1240 = vtanh.pop %v1208
      %v1241 = vtanh.pop %v1209
      %v1242 = vadd.f32 %v1210, 1.0
      %v1243 = vadd.f32 %v1211, 1.0
      %v1244 = vadd.f32 %v1212, 1.0
      %v1245 = vadd.f32 %v1213, 1.0
      %v1246 = vadd.f32 %v1214, 1.0
      %v1247 = vadd.f32 %v1215, 1.0
      %v1248 = vadd.f32 %v1216, 1.0
      %v1249 = vadd.f32 %v1217, 1.0
      %v1250 = vadd.f32 %v1218, 1.0
      %v1251 = vadd.f32 %v1219, 1.0
      %v1252 = vadd.f32 %v1220, 1.0
      %v1253 = vadd.f32 %v1221, 1.0
      %v1254 = vadd.f32 %v1222, 1.0
      %v1255 = vadd.f32 %v1223, 1.0
      %v1256 = vadd.f32 %v1224, 1.0
      %v1257 = vadd.f32 %v1225, 1.0
      %v1258 = vadd.f32 %v1226, 1.0
      %v1259 = vadd.f32 %v1227, 1.0
      %v1260 = vadd.f32 %v1228, 1.0
      %v1261 = vadd.f32 %v1229, 1.0
      %v1262 = vadd.f32 %v1230, 1.0
      %v1263 = vadd.f32 %v1231, 1.0
      %v1264 = vadd.f32 %v1232, 1.0
      %v1265 = vadd.f32 %v1233, 1.0
      %v1266 = vadd.f32 %v1234, 1.0
      %v1267 = vadd.f32 %v1235, 1.0
      %v1268 = vadd.f32 %v1236, 1.0
      %v1269 = vadd.f32 %v1237, 1.0
      %v1270 = vadd.f32 %v1238, 1.0
      %v1271 = vadd.f32 %v1239, 1.0
      %v1272 = vadd.f32 %v1240, 1.0
      %v1273 = vadd.f32 %v1241, 1.0
      %v1274 = vmul.f32 %v1242, 0.5
      %v1275 = vmul.f32 %v1243, 0.5
      %v1276 = vmul.f32 %v1244, 0.5
      %v1277 = vmul.f32 %v1245, 0.5
      %v1278 = vmul.f32 %v1246, 0.5
      %v1279 = vmul.f32 %v1247, 0.5
      %v1280 = vmul.f32 %v1248, 0.5
      %v1281 = vmul.f32 %v1249, 0.5
      %v1282 = vmul.f32 %v1250, 0.5
      %v1283 = vmul.f32 %v1251, 0.5
      %v1284 = vmul.f32 %v1252, 0.5
      %v1285 = vmul.f32 %v1253, 0.5
      %v1286 = vmul.f32 %v1254, 0.5
      %v1287 = vmul.f32 %v1255, 0.5
      %v1288 = vmul.f32 %v1256, 0.5
      %v1289 = vmul.f32 %v1257, 0.5
      %v1290 = vmul.f32 %v1258, 0.5
      %v1291 = vmul.f32 %v1259, 0.5
      %v1292 = vmul.f32 %v1260, 0.5
      %v1293 = vmul.f32 %v1261, 0.5
      %v1294 = vmul.f32 %v1262, 0.5
      %v1295 = vmul.f32 %v1263, 0.5
      %v1296 = vmul.f32 %v1264, 0.5
      %v1297 = vmul.f32 %v1265, 0.5
      %v1298 = vmul.f32 %v1266, 0.5
      %v1299 = vmul.f32 %v1267, 0.5
      %v1300 = vmul.f32 %v1268, 0.5
      %v1301 = vmul.f32 %v1269, 0.5
      %v1302 = vmul.f32 %v1270, 0.5
      %v1303 = vmul.f32 %v1271, 0.5
      %v1304 = vmul.f32 %v1272, 0.5
      %v1305 = vmul.f32 %v1273, 0.5
      %v1306 = vmul.f32 %v924, %v1274
      %v1307 = vmul.f32 %v927, %v1275
      %v1308 = vmul.f32 %v932, %v1276
      %v1309 = vmul.f32 %v935, %v1277
      %v1310 = vmul.f32 %v940, %v1278
      %v1311 = vmul.f32 %v943, %v1279
      %v1312 = vmul.f32 %v948, %v1280
      %v1313 = vmul.f32 %v951, %v1281
      %v1314 = vmul.f32 %v956, %v1282
      %v1315 = vmul.f32 %v959, %v1283
      %v1316 = vmul.f32 %v964, %v1284
      %v1317 = vmul.f32 %v967, %v1285
      %v1318 = vmul.f32 %v972, %v1286
      %v1319 = vmul.f32 %v975, %v1287
      %v1320 = vmul.f32 %v980, %v1288
      %v1321 = vmul.f32 %v983, %v1289
      %v1322 = vmul.f32 %v988, %v1290
      %v1323 = vmul.f32 %v991, %v1291
      %v1324 = vmul.f32 %v996, %v1292
      %v1325 = vmul.f32 %v999, %v1293
      %v1326 = vmul.f32 %v1004, %v1294
      %v1327 = vmul.f32 %v1007, %v1295
      %v1328 = vmul.f32 %v1012, %v1296
      %v1329 = vmul.f32 %v1015, %v1297
      %v1330 = vmul.f32 %v1020, %v1298
      %v1331 = vmul.f32 %v1023, %v1299
      %v1332 = vmul.f32 %v1028, %v1300
      %v1333 = vmul.f32 %v1031, %v1301
      %v1334 = vmul.f32 %v1036, %v1302
      %v1335 = vmul.f32 %v1039, %v1303
      %v1336 = vmul.f32 %v1044, %v1304
      %v1337 = vmul.f32 %v1047, %v1305
      %v1338 = vld [vmem:[#allocation3] sm:$0xff]
      %v1339 = vld [vmem:[#allocation3 + $0x8] sm:$0xff]
      %v1340 = vld [vmem:[#allocation3 + $0x10] sm:$0xff]
      %v1341 = vld [vmem:[#allocation3 + $0x18] sm:$0xff]
      %v1342 = vld [vmem:[#allocation3 + $0x20] sm:$0xff]
      %v1343 = vld [vmem:[#allocation3 + $0x28] sm:$0xff]
      %v1344 = vld [vmem:[#allocation3 + $0x30] sm:$0xff]
      %v1345 = vld [vmem:[#allocation3 + $0x38] sm:$0xff]
      %v1346 = vld [vmem:[#allocation3 + $0x40] sm:$0xff]
      %v1347 = vld [vmem:[#allocation3 + $0x48] sm:$0xff]
      %v1348 = vld [vmem:[#allocation3 + $0x50] sm:$0xff]
      %v1349 = vld [vmem:[#allocation3 + $0x58] sm:$0xff]
      %v1350 = vld [vmem:[#allocation3 + $0x60] sm:$0xff]
      %v1351 = vld [vmem:[#allocation3 + $0x68] sm:$0xff]
      %v1352 = vld [vmem:[#allocation3 + $0x70] sm:$0xff]
      %v1353 = vld [vmem:[#allocation3 + $0x78] sm:$0xff]
      %v1354 = vld [vmem:[#allocation3 + $0x80] sm:$0xff]
      %v1355 = vld [vmem:[#allocation3 + $0x88] sm:$0xff]
      %v1356 = vld [vmem:[#allocation3 + $0x90] sm:$0xff]
      %v1357 = vld [vmem:[#allocation3 + $0x98] sm:$0xff]
      %v1358 = vld [vmem:[#allocation3 + $0xa0] sm:$0xff]
      %v1359 = vld [vmem:[#allocation3 + $0xa8] sm:$0xff]
      %v1360 = vld [vmem:[#allocation3 + $0xb0] sm:$0xff]
      %v1361 = vld [vmem:[#allocation3 + $0xb8] sm:$0xff]
      %v1362 = vld [vmem:[#allocation3 + $0xc0] sm:$0xff]
      %v1363 = vld [vmem:[#allocation3 + $0xc8] sm:$0xff]
      %v1364 = vld [vmem:[#allocation3 + $0xd0] sm:$0xff]
      %v1365 = vld [vmem:[#allocation3 + $0xd8] sm:$0xff]
      %v1366 = vld [vmem:[#allocation3 + $0xe0] sm:$0xff]
      %v1367 = vld [vmem:[#allocation3 + $0xe8] sm:$0xff]
      %v1368 = vld [vmem:[#allocation3 + $0xf0] sm:$0xff]
      %v1369 = vld [vmem:[#allocation3 + $0xf8] sm:$0xff]
      %v1370 = vpack.c.bf16 %v1307, %v1306
      %v1371 = vpack.c.bf16 %v1309, %v1308
      %v1372 = vpack.c.bf16 %v1311, %v1310
      %v1373 = vpack.c.bf16 %v1313, %v1312
      %v1374 = vpack.c.bf16 %v1315, %v1314
      %v1375 = vpack.c.bf16 %v1317, %v1316
      %v1376 = vpack.c.bf16 %v1319, %v1318
      %v1377 = vpack.c.bf16 %v1321, %v1320
      %v1378 = vpack.c.bf16 %v1323, %v1322
      %v1379 = vpack.c.bf16 %v1325, %v1324
      %v1380 = vpack.c.bf16 %v1327, %v1326
      %v1381 = vpack.c.bf16 %v1329, %v1328
      %v1382 = vpack.c.bf16 %v1331, %v1330
      %v1383 = vpack.c.bf16 %v1333, %v1332
      %v1384 = vpack.c.bf16 %v1335, %v1334
      %v1385 = vpack.c.bf16 %v1337, %v1336
      %v1386 = vld [vmem:[%s285] sm:$0xf]
      %v1387 = vld [vmem:[%s285 + $0x4] sm:$0xf]
      %v1390 = vunpack.c.l.b16 %v1386
      %v1391 = vunpack.c.l.b16 %v1387
      %v1392 = vpack.c.b16 %v1391, %v1390
      %vm1394 = vcmask 130048
      %v1396 = vsel %vm1394, %v1370, 0
      %v1399 = vsel %vm1394, %v1371, 0
      %v1402 = vsel %vm1394, %v1372, 0
      %v1405 = vsel %vm1394, %v1373, 0
      %v1408 = vsel %vm1394, %v1374, 0
      %v1411 = vsel %vm1394, %v1375, 0
      %v1414 = vsel %vm1394, %v1376, 0
      %v1417 = vsel %vm1394, %v1377, 0
      %v1420 = vsel %vm1394, %v1378, 0
      %v1423 = vsel %vm1394, %v1379, 0
      %v1426 = vsel %vm1394, %v1380, 0
      %v1429 = vsel %vm1394, %v1381, 0
      %v1432 = vsel %vm1394, %v1382, 0
      %v1435 = vsel %vm1394, %v1383, 0
      %v1438 = vsel %vm1394, %v1384, 0
      %v1441 = vsel %vm1394, %v1385, 0
      %1443 = vmatprep.subr.bf16.mxu0 0
      %1444 = vmatpush1.bf16.msra.mxu0 %v1392
      %1445 = vmatprep.subr.bf16.mxu0 0
      %1446 = vmatpush1.bf16.msra.mxu0 0
      %1447 = vmatprep.subr.bf16.mxu0 0
      %1448 = vmatpush1.bf16.msra.mxu0 0
      %1449 = vmatprep.subr.bf16.mxu0 0
      %1450 = vmatpush1.bf16.msra.mxu0 0
      %1451 = vmatprep.subr.bf16.mxu0 0
      %1452 = vmatpush1.bf16.msra.mxu0 0
      %1453 = vmatprep.subr.bf16.mxu0 0
      %1454 = vmatpush1.bf16.msra.mxu0 0
      %1455 = vmatprep.subr.bf16.mxu0 0
      %1456 = vmatpush1.bf16.msra.mxu0 0
      %1457 = vmatprep.subr.bf16.mxu0 0
      %1458 = vmatpush1.bf16.msra.mxu0 0
      %1459 = vmatprep.subr.bf16.mxu0 0
      %1460 = vmatpush1.bf16.msra.mxu0 0
      %1461 = vmatprep.subr.bf16.mxu0 0
      %1462 = vmatpush1.bf16.msra.mxu0 0
      %1463 = vmatprep.subr.bf16.mxu0 0
      %1464 = vmatpush1.bf16.msra.mxu0 0
      %1465 = vmatprep.subr.bf16.mxu0 0
      %1466 = vmatpush1.bf16.msra.mxu0 0
      %1467 = vmatprep.subr.bf16.mxu0 0
      %1468 = vmatpush1.bf16.msra.mxu0 0
      %1469 = vmatprep.subr.bf16.mxu0 0
      %1470 = vmatpush1.bf16.msra.mxu0 0
      %1471 = vmatprep.subr.bf16.mxu0 0
      %1472 = vmatpush1.bf16.msra.mxu0 0
      %1473 = vmatprep.subr.bf16.mxu0 0
      %1474 = vmatpush1.bf16.msra.mxu0 0
      %1475 = vmatprep.mubr.bf16.mxu0 0
      %1476 = vmatmul.mubr.bf16.gmra.mrb[0].mxu0 %v1396
      %v1477 = vpop.f32.mrb[0].mxu0
      %v1478 = vadd.f32 0.0, %v1477
      %v1479 = vpop.f32.mrb[0].mxu0
      %v1480 = vpop.f32.mrb[0].mxu0
      %v1481 = vadd.f32 0.0, %v1480
      %v1482 = vpop.f32.mrb[0].mxu0
      %1483 = vmatprep.mubr.bf16.mxu0 0
      %1484 = vmatmul.mubr.bf16.gmra.mrb[0].mxu0 %v1399
      %v1485 = vpop.f32.mrb[0].mxu0
      %v1486 = vadd.f32 0.0, %v1485
      %v1487 = vpop.f32.mrb[0].mxu0
      %v1488 = vpop.f32.mrb[0].mxu0
      %v1489 = vadd.f32 0.0, %v1488
      %v1490 = vpop.f32.mrb[0].mxu0
      %1491 = vmatprep.mubr.bf16.mxu0 0
      %1492 = vmatmul.mubr.bf16.gmra.mrb[0].mxu0 %v1402
      %v1493 = vpop.f32.mrb[0].mxu0
      %v1494 = vadd.f32 0.0, %v1493
      %v1495 = vpop.f32.mrb[0].mxu0
      %v1496 = vpop.f32.mrb[0].mxu0
      %v1497 = vadd.f32 0.0, %v1496
      %v1498 = vpop.f32.mrb[0].mxu0
      %1499 = vmatprep.mubr.bf16.mxu0 0
      %1500 = vmatmul.mubr.bf16.gmra.mrb[0].mxu0 %v1405
      %v1501 = vpop.f32.mrb[0].mxu0
      %v1502 = vadd.f32 0.0, %v1501
      %v1503 = vpop.f32.mrb[0].mxu0
      %v1504 = vpop.f32.mrb[0].mxu0
      %v1505 = vadd.f32 0.0, %v1504
      %v1506 = vpop.f32.mrb[0].mxu0
      %1507 = vmatprep.mubr.bf16.mxu0 0
      %1508 = vmatmul.mubr.bf16.gmra.mrb[0].mxu0 %v1408
      %v1509 = vpop.f32.mrb[0].mxu0
      %v1510 = vadd.f32 0.0, %v1509
      %v1511 = vpop.f32.mrb[0].mxu0
      %v1512 = vpop.f32.mrb[0].mxu0
      %v1513 = vadd.f32 0.0, %v1512
      %v1514 = vpop.f32.mrb[0].mxu0
      %1515 = vmatprep.mubr.bf16.mxu0 0
      %1516 = vmatmul.mubr.bf16.gmra.mrb[0].mxu0 %v1411
      %v1517 = vpop.f32.mrb[0].mxu0
      %v1518 = vadd.f32 0.0, %v1517
      %v1519 = vpop.f32.mrb[0].mxu0
      %v1520 = vpop.f32.mrb[0].mxu0
      %v1521 = vadd.f32 0.0, %v1520
      %v1522 = vpop.f32.mrb[0].mxu0
      %1523 = vmatprep.mubr.bf16.mxu0 0
      %1524 = vmatmul.mubr.bf16.gmra.mrb[0].mxu0 %v1414
      %v1525 = vpop.f32.mrb[0].mxu0
      %v1526 = vadd.f32 0.0, %v1525
      %v1527 = vpop.f32.mrb[0].mxu0
      %v1528 = vpop.f32.mrb[0].mxu0
      %v1529 = vadd.f32 0.0, %v1528
      %v1530 = vpop.f32.mrb[0].mxu0
      %1531 = vmatprep.mubr.bf16.mxu0 0
      %1532 = vmatmul.mubr.bf16.gmra.mrb[0].mxu0 %v1417
      %v1533 = vpop.f32.mrb[0].mxu0
      %v1534 = vadd.f32 0.0, %v1533
      %v1535 = vpop.f32.mrb[0].mxu0
      %v1536 = vpop.f32.mrb[0].mxu0
      %v1537 = vadd.f32 0.0, %v1536
      %v1538 = vpop.f32.mrb[0].mxu0
      %1539 = vmatprep.mubr.bf16.mxu0 0
      %1540 = vmatmul.mubr.bf16.gmra.mrb[0].mxu0 %v1420
      %v1541 = vpop.f32.mrb[0].mxu0
      %v1542 = vadd.f32 0.0, %v1541
      %v1543 = vpop.f32.mrb[0].mxu0
      %v1544 = vpop.f32.mrb[0].mxu0
      %v1545 = vadd.f32 0.0, %v1544
      %v1546 = vpop.f32.mrb[0].mxu0
      %1547 = vmatprep.mubr.bf16.mxu0 0
      %1548 = vmatmul.mubr.bf16.gmra.mrb[0].mxu0 %v1423
      %v1549 = vpop.f32.mrb[0].mxu0
      %v1550 = vadd.f32 0.0, %v1549
      %v1551 = vpop.f32.mrb[0].mxu0
      %v1552 = vpop.f32.mrb[0].mxu0
      %v1553 = vadd.f32 0.0, %v1552
      %v1554 = vpop.f32.mrb[0].mxu0
      %1555 = vmatprep.mubr.bf16.mxu0 0
      %1556 = vmatmul.mubr.bf16.gmra.mrb[0].mxu0 %v1426
      %v1557 = vpop.f32.mrb[0].mxu0
      %v1558 = vadd.f32 0.0, %v1557
      %v1559 = vpop.f32.mrb[0].mxu0
      %v1560 = vpop.f32.mrb[0].mxu0
      %v1561 = vadd.f32 0.0, %v1560
      %v1562 = vpop.f32.mrb[0].mxu0
      %1563 = vmatprep.mubr.bf16.mxu0 0
      %1564 = vmatmul.mubr.bf16.gmra.mrb[0].mxu0 %v1429
      %v1565 = vpop.f32.mrb[0].mxu0
      %v1566 = vadd.f32 0.0, %v1565
      %v1567 = vpop.f32.mrb[0].mxu0
      %v1568 = vpop.f32.mrb[0].mxu0
      %v1569 = vadd.f32 0.0, %v1568
      %v1570 = vpop.f32.mrb[0].mxu0
      %1571 = vmatprep.mubr.bf16.mxu0 0
      %1572 = vmatmul.mubr.bf16.gmra.mrb[0].mxu0 %v1432
      %v1573 = vpop.f32.mrb[0].mxu0
      %v1574 = vadd.f32 0.0, %v1573
      %v1575 = vpop.f32.mrb[0].mxu0
      %v1576 = vpop.f32.mrb[0].mxu0
      %v1577 = vadd.f32 0.0, %v1576
      %v1578 = vpop.f32.mrb[0].mxu0
      %1579 = vmatprep.mubr.bf16.mxu0 0
      %1580 = vmatmul.mubr.bf16.gmra.mrb[0].mxu0 %v1435
      %v1581 = vpop.f32.mrb[0].mxu0
      %v1582 = vadd.f32 0.0, %v1581
      %v1583 = vpop.f32.mrb[0].mxu0
      %v1584 = vpop.f32.mrb[0].mxu0
      %v1585 = vadd.f32 0.0, %v1584
      %v1586 = vpop.f32.mrb[0].mxu0
      %1587 = vmatprep.mubr.bf16.mxu0 0
      %1588 = vmatmul.mubr.bf16.gmra.mrb[0].mxu0 %v1438
      %v1589 = vpop.f32.mrb[0].mxu0
      %v1590 = vadd.f32 0.0, %v1589
      %v1591 = vpop.f32.mrb[0].mxu0
      %v1592 = vpop.f32.mrb[0].mxu0
      %v1593 = vadd.f32 0.0, %v1592
      %v1594 = vpop.f32.mrb[0].mxu0
      %1595 = vmatprep.mubr.bf16.mxu0 0
      %1596 = vmatmul.mubr.bf16.gmra.mrb[0].mxu0 %v1441
      %v1597 = vpop.f32.mrb[0].mxu0
      %v1598 = vadd.f32 0.0, %v1597
      %v1599 = vpop.f32.mrb[0].mxu0
      %v1600 = vpop.f32.mrb[0].mxu0
      %v1601 = vadd.f32 0.0, %v1600
      %v1602 = vpop.f32.mrb[0].mxu0
      %1603 = vdwg.mxu0
      %v1604 = vadd.f32 %v1338, %v1478
      %v1605 = vadd.f32 %v1339, %v1481
      %v1606 = vadd.f32 %v1340, %v1486
      %v1607 = vadd.f32 %v1341, %v1489
      %v1608 = vadd.f32 %v1342, %v1494
      %v1609 = vadd.f32 %v1343, %v1497
      %v1610 = vadd.f32 %v1344, %v1502
      %v1611 = vadd.f32 %v1345, %v1505
      %v1612 = vadd.f32 %v1346, %v1510
      %v1613 = vadd.f32 %v1347, %v1513
      %v1614 = vadd.f32 %v1348, %v1518
      %v1615 = vadd.f32 %v1349, %v1521
      %v1616 = vadd.f32 %v1350, %v1526
      %v1617 = vadd.f32 %v1351, %v1529
      %v1618 = vadd.f32 %v1352, %v1534
      %v1619 = vadd.f32 %v1353, %v1537
      %v1620 = vadd.f32 %v1354, %v1542
      %v1621 = vadd.f32 %v1355, %v1545
      %v1622 = vadd.f32 %v1356, %v1550
      %v1623 = vadd.f32 %v1357, %v1553
      %v1624 = vadd.f32 %v1358, %v1558
      %v1625 = vadd.f32 %v1359, %v1561
      %v1626 = vadd.f32 %v1360, %v1566
      %v1627 = vadd.f32 %v1361, %v1569
      %v1628 = vadd.f32 %v1362, %v1574
      %v1629 = vadd.f32 %v1363, %v1577
      %v1630 = vadd.f32 %v1364, %v1582
      %v1631 = vadd.f32 %v1365, %v1585
      %v1632 = vadd.f32 %v1366, %v1590
      %v1633 = vadd.f32 %v1367, %v1593
      %v1634 = vadd.f32 %v1368, %v1598
      %v1635 = vadd.f32 %v1369, %v1601
      %1636 = vst.msk [vmem:[#allocation3] sm:$0xff] %vm836, %v1604
      %1637 = vst.msk [vmem:[#allocation3 + $0x8] sm:$0xff] %vm836, %v1605
      %1638 = vst.msk [vmem:[#allocation3 + $0x10] sm:$0xff] %vm836, %v1606
      %1639 = vst.msk [vmem:[#allocation3 + $0x18] sm:$0xff] %vm836, %v1607
      %1640 = vst.msk [vmem:[#allocation3 + $0x20] sm:$0xff] %vm836, %v1608
      %1641 = vst.msk [vmem:[#allocation3 + $0x28] sm:$0xff] %vm836, %v1609
      %1642 = vst.msk [vmem:[#allocation3 + $0x30] sm:$0xff] %vm836, %v1610
      %1643 = vst.msk [vmem:[#allocation3 + $0x38] sm:$0xff] %vm836, %v1611
      %1644 = vst.msk [vmem:[#allocation3 + $0x40] sm:$0xff] %vm836, %v1612
      %1645 = vst.msk [vmem:[#allocation3 + $0x48] sm:$0xff] %vm836, %v1613
      %1646 = vst.msk [vmem:[#allocation3 + $0x50] sm:$0xff] %vm836, %v1614
      %1647 = vst.msk [vmem:[#allocation3 + $0x58] sm:$0xff] %vm836, %v1615
      %1648 = vst.msk [vmem:[#allocation3 + $0x60] sm:$0xff] %vm836, %v1616
      %1649 = vst.msk [vmem:[#allocation3 + $0x68] sm:$0xff] %vm836, %v1617
      %1650 = vst.msk [vmem:[#allocation3 + $0x70] sm:$0xff] %vm836, %v1618
      %1651 = vst.msk [vmem:[#allocation3 + $0x78] sm:$0xff] %vm836, %v1619
      %1652 = vst.msk [vmem:[#allocation3 + $0x80] sm:$0xff] %vm836, %v1620
      %1653 = vst.msk [vmem:[#allocation3 + $0x88] sm:$0xff] %vm836, %v1621
      %1654 = vst.msk [vmem:[#allocation3 + $0x90] sm:$0xff] %vm836, %v1622
      %1655 = vst.msk [vmem:[#allocation3 + $0x98] sm:$0xff] %vm836, %v1623
      %1656 = vst.msk [vmem:[#allocation3 + $0xa0] sm:$0xff] %vm836, %v1624
      %1657 = vst.msk [vmem:[#allocation3 + $0xa8] sm:$0xff] %vm836, %v1625
      %1658 = vst.msk [vmem:[#allocation3 + $0xb0] sm:$0xff] %vm836, %v1626
      %1659 = vst.msk [vmem:[#allocation3 + $0xb8] sm:$0xff] %vm836, %v1627
      %1660 = vst.msk [vmem:[#allocation3 + $0xc0] sm:$0xff] %vm836, %v1628
      %1661 = vst.msk [vmem:[#allocation3 + $0xc8] sm:$0xff] %vm836, %v1629
      %1662 = vst.msk [vmem:[#allocation3 + $0xd0] sm:$0xff] %vm836, %v1630
      %1663 = vst.msk [vmem:[#allocation3 + $0xd8] sm:$0xff] %vm836, %v1631
      %1664 = vst.msk [vmem:[#allocation3 + $0xe0] sm:$0xff] %vm836, %v1632
      %1665 = vst.msk [vmem:[#allocation3 + $0xe8] sm:$0xff] %vm836, %v1633
      %1666 = vst.msk [vmem:[#allocation3 + $0xf0] sm:$0xff] %vm836, %v1634
      %1667 = vst.msk [vmem:[#allocation3 + $0xf8] sm:$0xff] %vm836, %v1635
      // Predicated region
      $region45: #{_mlp_residual_branch_impl.1} parent=39 // pred_check
        %p1668 = pneg %p294
      $region46: #{_mlp_residual_branch_impl.1} parent=39 // pred_check_branch
        %1670 = sbr.rel (%p1668) target = $region48
      $region47: #{_mlp_residual_branch_impl.1} parent=39 // pred_region
        %v1671 = vld [vmem:[%s272] sm:$0xff]
        %v1672 = vld [vmem:[%s272 + $0x8] sm:$0xff]
        %v1673 = vld [vmem:[%s272 + $0x10] sm:$0xff]
        %v1674 = vld [vmem:[%s272 + $0x18] sm:$0xff]
        %v1675 = vld [vmem:[%s272 + $0x20] sm:$0xff]
        %v1676 = vld [vmem:[%s272 + $0x28] sm:$0xff]
        %v1677 = vld [vmem:[%s272 + $0x30] sm:$0xff]
        %v1678 = vld [vmem:[%s272 + $0x38] sm:$0xff]
        %v1679 = vld [vmem:[%s272 + $0x40] sm:$0xff]
        %v1680 = vld [vmem:[%s272 + $0x48] sm:$0xff]
        %v1681 = vld [vmem:[%s272 + $0x50] sm:$0xff]
        %v1682 = vld [vmem:[%s272 + $0x58] sm:$0xff]
        %v1683 = vld [vmem:[%s272 + $0x60] sm:$0xff]
        %v1684 = vld [vmem:[%s272 + $0x68] sm:$0xff]
        %v1685 = vld [vmem:[%s272 + $0x70] sm:$0xff]
        %v1686 = vld [vmem:[%s272 + $0x78] sm:$0xff]
        %v1687 = vld [vmem:[%s272 + $0x80] sm:$0xff]
        %v1688 = vld [vmem:[%s272 + $0x88] sm:$0xff]
        %v1689 = vld [vmem:[%s272 + $0x90] sm:$0xff]
        %v1690 = vld [vmem:[%s272 + $0x98] sm:$0xff]
        %v1691 = vld [vmem:[%s272 + $0xa0] sm:$0xff]
        %v1692 = vld [vmem:[%s272 + $0xa8] sm:$0xff]
        %v1693 = vld [vmem:[%s272 + $0xb0] sm:$0xff]
        %v1694 = vld [vmem:[%s272 + $0xb8] sm:$0xff]
        %v1695 = vld [vmem:[%s272 + $0xc0] sm:$0xff]
        %v1696 = vld [vmem:[%s272 + $0xc8] sm:$0xff]
        %v1697 = vld [vmem:[%s272 + $0xd0] sm:$0xff]
        %v1698 = vld [vmem:[%s272 + $0xd8] sm:$0xff]
        %v1699 = vld [vmem:[%s272 + $0xe0] sm:$0xff]
        %v1700 = vld [vmem:[%s272 + $0xe8] sm:$0xff]
        %v1701 = vld [vmem:[%s272 + $0xf0] sm:$0xff]
        %v1702 = vld [vmem:[%s272 + $0xf8] sm:$0xff]
        %v1703 = vld [vmem:[#allocation3] sm:$0xff]
        %v1704 = vld [vmem:[#allocation3 + $0x8] sm:$0xff]
        %v1705 = vld [vmem:[#allocation3 + $0x10] sm:$0xff]
        %v1706 = vld [vmem:[#allocation3 + $0x18] sm:$0xff]
        %v1707 = vld [vmem:[#allocation3 + $0x20] sm:$0xff]
        %v1708 = vld [vmem:[#allocation3 + $0x28] sm:$0xff]
        %v1709 = vld [vmem:[#allocation3 + $0x30] sm:$0xff]
        %v1710 = vld [vmem:[#allocation3 + $0x38] sm:$0xff]
        %v1711 = vld [vmem:[#allocation3 + $0x40] sm:$0xff]
        %v1712 = vld [vmem:[#allocation3 + $0x48] sm:$0xff]
        %v1713 = vld [vmem:[#allocation3 + $0x50] sm:$0xff]
        %v1714 = vld [vmem:[#allocation3 + $0x58] sm:$0xff]
        %v1715 = vld [vmem:[#allocation3 + $0x60] sm:$0xff]
        %v1716 = vld [vmem:[#allocation3 + $0x68] sm:$0xff]
        %v1717 = vld [vmem:[#allocation3 + $0x70] sm:$0xff]
        %v1718 = vld [vmem:[#allocation3 + $0x78] sm:$0xff]
        %v1719 = vld [vmem:[#allocation3 + $0x80] sm:$0xff]
        %v1720 = vld [vmem:[#allocation3 + $0x88] sm:$0xff]
        %v1721 = vld [vmem:[#allocation3 + $0x90] sm:$0xff]
        %v1722 = vld [vmem:[#allocation3 + $0x98] sm:$0xff]
        %v1723 = vld [vmem:[#allocation3 + $0xa0] sm:$0xff]
        %v1724 = vld [vmem:[#allocation3 + $0xa8] sm:$0xff]
        %v1725 = vld [vmem:[#allocation3 + $0xb0] sm:$0xff]
        %v1726 = vld [vmem:[#allocation3 + $0xb8] sm:$0xff]
        %v1727 = vld [vmem:[#allocation3 + $0xc0] sm:$0xff]
        %v1728 = vld [vmem:[#allocation3 + $0xc8] sm:$0xff]
        %v1729 = vld [vmem:[#allocation3 + $0xd0] sm:$0xff]
        %v1730 = vld [vmem:[#allocation3 + $0xd8] sm:$0xff]
        %v1731 = vld [vmem:[#allocation3 + $0xe0] sm:$0xff]
        %v1732 = vld [vmem:[#allocation3 + $0xe8] sm:$0xff]
        %v1733 = vld [vmem:[#allocation3 + $0xf0] sm:$0xff]
        %v1734 = vld [vmem:[#allocation3 + $0xf8] sm:$0xff]
        %v1735 = vadd.f32 %v1671, %v1703
        %v1736 = vadd.f32 %v1672, %v1704
        %v1737 = vadd.f32 %v1673, %v1705
        %v1738 = vadd.f32 %v1674, %v1706
        %v1739 = vadd.f32 %v1675, %v1707
        %v1740 = vadd.f32 %v1676, %v1708
        %v1741 = vadd.f32 %v1677, %v1709
        %v1742 = vadd.f32 %v1678, %v1710
        %v1743 = vadd.f32 %v1679, %v1711
        %v1744 = vadd.f32 %v1680, %v1712
        %v1745 = vadd.f32 %v1681, %v1713
        %v1746 = vadd.f32 %v1682, %v1714
        %v1747 = vadd.f32 %v1683, %v1715
        %v1748 = vadd.f32 %v1684, %v1716
        %v1749 = vadd.f32 %v1685, %v1717
        %v1750 = vadd.f32 %v1686, %v1718
        %v1751 = vadd.f32 %v1687, %v1719
        %v1752 = vadd.f32 %v1688, %v1720
        %v1753 = vadd.f32 %v1689, %v1721
        %v1754 = vadd.f32 %v1690, %v1722
        %v1755 = vadd.f32 %v1691, %v1723
        %v1756 = vadd.f32 %v1692, %v1724
        %v1757 = vadd.f32 %v1693, %v1725
        %v1758 = vadd.f32 %v1694, %v1726
        %v1759 = vadd.f32 %v1695, %v1727
        %v1760 = vadd.f32 %v1696, %v1728
        %v1761 = vadd.f32 %v1697, %v1729
        %v1762 = vadd.f32 %v1698, %v1730
        %v1763 = vadd.f32 %v1699, %v1731
        %v1764 = vadd.f32 %v1700, %v1732
        %v1765 = vadd.f32 %v1701, %v1733
        %v1766 = vadd.f32 %v1702, %v1734
        %v1767 = vld [vmem:[%s4] sm:$0x1]
        %v1769 = vlaneseq
        %v1770 = vshrl.u32 %v1769, 7
        %v1771 = vsub.s32 0, %v1770
        %v1772 = vrot.slane %v1767, %v1771
        %v1774 = vadd.f32 %v1735, %v1772
        %v1775 = vadd.f32 %v1736, %v1772
        %v1776 = vadd.f32 %v1737, %v1772
        %v1777 = vadd.f32 %v1738, %v1772
        %v1778 = vadd.f32 %v1739, %v1772
        %v1779 = vadd.f32 %v1740, %v1772
        %v1780 = vadd.f32 %v1741, %v1772
        %v1781 = vadd.f32 %v1742, %v1772
        %v1782 = vadd.f32 %v1743, %v1772
        %v1783 = vadd.f32 %v1744, %v1772
        %v1784 = vadd.f32 %v1745, %v1772
        %v1785 = vadd.f32 %v1746, %v1772
        %v1786 = vadd.f32 %v1747, %v1772
        %v1787 = vadd.f32 %v1748, %v1772
        %v1788 = vadd.f32 %v1749, %v1772
        %v1789 = vadd.f32 %v1750, %v1772
        %v1790 = vadd.f32 %v1751, %v1772
        %v1791 = vadd.f32 %v1752, %v1772
        %v1792 = vadd.f32 %v1753, %v1772
        %v1793 = vadd.f32 %v1754, %v1772
        %v1794 = vadd.f32 %v1755, %v1772
        %v1795 = vadd.f32 %v1756, %v1772
        %v1796 = vadd.f32 %v1757, %v1772
        %v1797 = vadd.f32 %v1758, %v1772
        %v1798 = vadd.f32 %v1759, %v1772
        %v1799 = vadd.f32 %v1760, %v1772
        %v1800 = vadd.f32 %v1761, %v1772
        %v1801 = vadd.f32 %v1762, %v1772
        %v1802 = vadd.f32 %v1763, %v1772
        %v1803 = vadd.f32 %v1764, %v1772
        %v1804 = vadd.f32 %v1765, %v1772
        %v1805 = vadd.f32 %v1766, %v1772
        %1806 = vst.msk [vmem:[%s291] sm:$0xff] %vm836, %v1774
        %1807 = vst.msk [vmem:[%s291 + $0x8] sm:$0xff] %vm836, %v1775
        %1808 = vst.msk [vmem:[%s291 + $0x10] sm:$0xff] %vm836, %v1776
        %1809 = vst.msk [vmem:[%s291 + $0x18] sm:$0xff] %vm836, %v1777
        %1810 = vst.msk [vmem:[%s291 + $0x20] sm:$0xff] %vm836, %v1778
        %1811 = vst.msk [vmem:[%s291 + $0x28] sm:$0xff] %vm836, %v1779
        %1812 = vst.msk [vmem:[%s291 + $0x30] sm:$0xff] %vm836, %v1780
        %1813 = vst.msk [vmem:[%s291 + $0x38] sm:$0xff] %vm836, %v1781
        %1814 = vst.msk [vmem:[%s291 + $0x40] sm:$0xff] %vm836, %v1782
        %1815 = vst.msk [vmem:[%s291 + $0x48] sm:$0xff] %vm836, %v1783
        %1816 = vst.msk [vmem:[%s291 + $0x50] sm:$0xff] %vm836, %v1784
        %1817 = vst.msk [vmem:[%s291 + $0x58] sm:$0xff] %vm836, %v1785
        %1818 = vst.msk [vmem:[%s291 + $0x60] sm:$0xff] %vm836, %v1786
        %1819 = vst.msk [vmem:[%s291 + $0x68] sm:$0xff] %vm836, %v1787
        %1820 = vst.msk [vmem:[%s291 + $0x70] sm:$0xff] %vm836, %v1788
        %1821 = vst.msk [vmem:[%s291 + $0x78] sm:$0xff] %vm836, %v1789
        %1822 = vst.msk [vmem:[%s291 + $0x80] sm:$0xff] %vm836, %v1790
        %1823 = vst.msk [vmem:[%s291 + $0x88] sm:$0xff] %vm836, %v1791
        %1824 = vst.msk [vmem:[%s291 + $0x90] sm:$0xff] %vm836, %v1792
        %1825 = vst.msk [vmem:[%s291 + $0x98] sm:$0xff] %vm836, %v1793
        %1826 = vst.msk [vmem:[%s291 + $0xa0] sm:$0xff] %vm836, %v1794
        %1827 = vst.msk [vmem:[%s291 + $0xa8] sm:$0xff] %vm836, %v1795
        %1828 = vst.msk [vmem:[%s291 + $0xb0] sm:$0xff] %vm836, %v1796
        %1829 = vst.msk [vmem:[%s291 + $0xb8] sm:$0xff] %vm836, %v1797
        %1830 = vst.msk [vmem:[%s291 + $0xc0] sm:$0xff] %vm836, %v1798
        %1831 = vst.msk [vmem:[%s291 + $0xc8] sm:$0xff] %vm836, %v1799
        %1832 = vst.msk [vmem:[%s291 + $0xd0] sm:$0xff] %vm836, %v1800
        %1833 = vst.msk [vmem:[%s291 + $0xd8] sm:$0xff] %vm836, %v1801
        %1834 = vst.msk [vmem:[%s291 + $0xe0] sm:$0xff] %vm836, %v1802
        %1835 = vst.msk [vmem:[%s291 + $0xe8] sm:$0xff] %vm836, %v1803
        %1836 = vst.msk [vmem:[%s291 + $0xf0] sm:$0xff] %vm836, %v1804
        %1837 = vst.msk [vmem:[%s291 + $0xf8] sm:$0xff] %vm836, %v1805
      $region48: #{_mlp_residual_branch_impl.1} parent=39 // pred_fallthru
        _
      %s1838 = smul.u32 32, %s20
      %p1839 = scmp.lt.s32.totalorder %s1838, 63
      %s1840 = scalar_select %p1839, %s1838, 63
      %s1841 = smul.addr %s1840, 8
      %s1842 = scalar_lea.vmem %s5, %s1841
      // Predicated region
      $region49: #{_mlp_residual_branch_impl.1} parent=39 // pred_check
        %p1843 = pneg %p171
      $region50: #{_mlp_residual_branch_impl.1} parent=39 // pred_check_branch
        %1845 = sbr.rel (%p1843) target = $region52
      $region51: #{_mlp_residual_branch_impl.1} parent=39 // pred_region
        %s1846 = smul.u32 32, %s20
      $region52: #{_mlp_residual_branch_impl.1} parent=39 // pred_fallthru
        _
    $region40: #{_mlp_residual_branch_impl.1} parent=5 // pred_fallthru
      _
    %p1847 = scmp.le.s32.totalorder 2, %s11
    // Predicated region
    $region53: #{_mlp_residual_branch_impl.1} parent=5 // pred_check
      %p1848 = pneg %p1847
    $region54: #{_mlp_residual_branch_impl.1} parent=5 // pred_check_branch
      %1850 = sbr.rel (%p1848) target = $region56
    $region55: #{_mlp_residual_branch_impl.1} parent=5 // pred_region
      %s1851 = ssub.s32 %s11, 2
      // Predicated region
      $region57: #{_mlp_residual_branch_impl.1} parent=55 // pred_check
        %p1852 = pneg %p177
      $region58: #{_mlp_residual_branch_impl.1} parent=55 // pred_check_branch
        %1854 = sbr.rel (%p1852) target = $region60
      $region59: #{_mlp_residual_branch_impl.1} parent=55 // pred_region
        %s1855 = smul.u32 32, %s22
        %p1856 = scmp.lt.s32.totalorder %s1855, 63
        %s1857 = scalar_select %p1856, %s1855, 63
        %s1858 = smul.addr %s1857, 8
        %s1859 = scalar_lea.vmem %s5, %s1858
      $region60: #{_mlp_residual_branch_impl.1} parent=55 // pred_fallthru
        _
    $region56: #{_mlp_residual_branch_impl.1} parent=5 // pred_fallthru
      _
  $region6: #{_mlp_residual_branch_impl.1} parent=0 // loop_footer
    %s15 = sadd.s32 1, %s11
  $region7: #{_mlp_residual_branch_impl.1} parent=0 // loop_footer_branch
    %10 = sbr.rel target = $region3
  $region8: #{_mlp_residual_branch_impl.1} parent=0 // loop_exit
    _

</llo_original>
